<compile_context>
chip_gen: v7x
topology: tpu7x:2x2x1
jax: 0.10.0
libtpu: 0.0.40
codegen_flags: <defaults>
</compile_context>

<pallas_src>
import jax
import jax.numpy as jnp
from jax import lax
from jax.experimental import pallas as pl
from jax.experimental.pallas import tpu as pltpu

EPS = 1e-5          # nn.BatchNorm1d default eps
LANE = 128


def _round_up(n, m):
    return (n + m - 1) // m * m


# ---------------------------------------------------------------------------
# Kernel: 4 MXU matmuls + 3 fused BN-affine+ReLU on one batch tile.
# ---------------------------------------------------------------------------
def mlp_kernel(x_ref, w1_ref, w2_ref, w3_ref, w4_ref, s_ref, b_ref, b4_ref,
               out_ref):
    wdt = w1_ref.dtype

    # Hoisted (1, hidden) BN scale / folded-bias rows (no per-layer re-slicing).
    s1 = s_ref[0:1, :]; s2 = s_ref[1:2, :]; s3 = s_ref[2:3, :]
    b1 = b_ref[0:1, :]; b2 = b_ref[1:2, :]; b3 = b_ref[2:3, :]

    # Layer 1: f32 x cast to bf16 in-kernel; BN applied as f32 scale+bias on
    # the f32 accumulator.  Dropout = identity (eval).
    h = jnp.dot(x_ref[...].astype(wdt), w1_ref[...],
                preferred_element_type=jnp.float32)
    h = jnp.maximum(h * s1 + b1, 0.0)

    # Layer 2
    h = jnp.dot(h.astype(wdt), w2_ref[...], preferred_element_type=jnp.float32)
    h = jnp.maximum(h * s2 + b2, 0.0)

    # Layer 3
    h = jnp.dot(h.astype(wdt), w3_ref[...], preferred_element_type=jnp.float32)
    h = jnp.maximum(h * s3 + b3, 0.0)

    # Output layer: lane-aligned (N=128-padded) matmul, then store only the
    # first out_dim columns (narrow masked store -> minimal output HBM bytes).
    out = jnp.dot(h.astype(wdt), w4_ref[...],
                  preferred_element_type=jnp.float32) + b4_ref[...]
    out_dim = out_ref.shape[-1]
    out_ref[...] = out[:, :out_dim].astype(out_ref.dtype)


# ---------------------------------------------------------------------------
# Parameter preparation: BN affine extraction (f32), dtype cast, padding of
# the final-layer N to a lane-aligned width, bias/scale stacking.
# ---------------------------------------------------------------------------
def prepare_params(raw_params, *, weight_dtype=jnp.bfloat16):
    (w1, b1, g1, be1, m1, v1,
     w2, b2, g2, be2, m2, v2,
     w3, b3, g3, be3, m3, v3,
     w4, b4) = raw_params

    def bn_affine(b, g, be, m, v):
        scale = g * lax.rsqrt(v + EPS)           # (1, d) f32
        bias = (b - m) * scale + be              # (1, d) f32 (linear bias folded)
        return scale, bias

    s1, c1 = bn_affine(b1, g1, be1, m1, v1)
    s2, c2 = bn_affine(b2, g2, be2, m2, v2)
    s3, c3 = bn_affine(b3, g3, be3, m3, v3)

    in_dim, hidden = w1.shape
    out_dim = w4.shape[1]
    out_pad = _round_up(out_dim, LANE)

    w4p = jnp.pad(w4, ((0, 0), (0, out_pad - out_dim)))
    b4p = jnp.pad(b4, ((0, 0), (0, out_pad - out_dim)))

    return {
        "w1": w1.astype(weight_dtype),          # raw weights in bf16 (MXU)
        "w2": w2.astype(weight_dtype),
        "w3": w3.astype(weight_dtype),
        "w4": w4p.astype(weight_dtype),
        "s123": jnp.concatenate([s1, s2, s3], 0).astype(jnp.float32),
        "b123": jnp.concatenate([c1, c2, c3], 0).astype(jnp.float32),
        "b4": b4p.astype(jnp.float32),
        "in_dim": in_dim, "hidden": hidden, "out_dim": out_dim,
    }


# ---------------------------------------------------------------------------
# Wrapper: batch-tiled pallas_call (no activation copies in the wrapper).
# ---------------------------------------------------------------------------
def mlp_classifier_forward(x, prep, *, block_b=512, single_buffer_weights=False):
    B, in_dim = x.shape
    assert in_dim == prep["in_dim"]
    hidden = prep["hidden"]
    out_dim = prep["out_dim"]
    out_pad = prep["w4"].shape[1]
    wbytes = prep["w1"].dtype.itemsize

    # Big batch tiles (amortize grid-step overhead, fill the MXU), but cap at
    # ceil(B/2) so there are >= 2 tiles whenever possible -> the "parallel"
    # axis can shard across v7x's two TensorCores.
    tb = max(8, min(_round_up(block_b, 8), _round_up(pl.cdiv(B, 2), 8)))
    grid = (pl.cdiv(B, tb),)

    # Constant-index (VMEM-resident) specs for weights / BN constants.
    # On v7x with hidden >= ~2K, pass single_buffer_weights=True to halve
    # weight residency (pl.Buffered(1)) against the 64 MiB VMEM.
    def const(shape):
        if single_buffer_weights:
            return pl.BlockSpec(shape, lambda i: (0, 0),
                                pipeline_mode=pl.Buffered(1))
        return pl.BlockSpec(shape, lambda i: (0, 0))

    # VMEM budget (explicit, with headroom) and cost hint for XLA scheduling.
    nbuf_w = 1 if single_buffer_weights else 2
    weight_bytes = (in_dim * hidden + 2 * hidden * hidden + hidden * out_pad) * wbytes
    const_bytes = (2 * 3 * hidden + out_pad) * 4
    stream_bytes = 2 * tb * (in_dim + out_dim) * 4        # double-buffered x/out tiles
    interm_bytes = 4 * tb * max(hidden, out_pad) * 4      # live f32 intermediates
    vmem_limit = int(1.5 * (nbuf_w * (weight_bytes + const_bytes)
                            + stream_bytes + interm_bytes)) + (2 << 20)
    vmem_limit = min(vmem_limit, 64 << 20)

    flops = 2 * B * (in_dim * hidden + 2 * hidden * hidden + hidden * out_dim)
    bytes_accessed = (x.size * x.dtype.itemsize + B * out_dim * 4
                      + weight_bytes + const_bytes)

    out = pl.pallas_call(
        mlp_kernel,
        out_shape=jax.ShapeDtypeStruct((B, out_dim), jnp.float32),
        grid=grid,
        in_specs=[
            pl.BlockSpec((tb, in_dim), lambda i: (i, 0)),  # f32 x, tiled on batch
            const(prep["w1"].shape),
            const(prep["w2"].shape),
            const(prep["w3"].shape),
            const(prep["w4"].shape),
            const(prep["s123"].shape),
            const(prep["b123"].shape),
            const(prep["b4"].shape),
        ],
        out_specs=pl.BlockSpec((tb, out_dim), lambda i: (i, 0)),
        compiler_params=pltpu.CompilerParams(
            dimension_semantics=("parallel",),     # batch tiles independent
            vmem_limit_bytes=vmem_limit),
        cost_estimate=pl.CostEstimate(flops=flops, transcendentals=0,
                                      bytes_accessed=bytes_accessed),
    )(x, prep["w1"], prep["w2"], prep["w3"], prep["w4"],
      prep["s123"], prep["b123"], prep["b4"])

    return out


# ---------------------------------------------------------------------------
# Synthetic parameters (PyTorch-layout semantics, weights pre-transposed).
# ---------------------------------------------------------------------------
def init_params(key, input_dim, hidden_dim, output_dim):
    keys = iter(jax.random.split(key, 20))   # 4 linears * 2 + 3 batchnorms * 4

    def linear(in_d, out_d):
        w = jax.random.normal(next(keys), (in_d, out_d), jnp.float32) * 0.05
        b = jax.random.normal(next(keys), (1, out_d), jnp.float32) * 0.05
        return w, b

    def batchnorm(d):
        gamma = jax.random.uniform(next(keys), (1, d), jnp.float32, 0.5, 1.5)
        beta = jax.random.normal(next(keys), (1, d), jnp.float32) * 0.1
        mean = jax.random.normal(next(keys), (1, d), jnp.float32) * 0.1
        var = jax.random.uniform(next(keys), (1, d), jnp.float32, 0.5, 1.5)
        return gamma, beta, mean, var

    p = []
    w, b = linear(input_dim, hidden_dim); p += [w, b]; p += list(batchnorm(hidden_dim))
    w, b = linear(hidden_dim, hidden_dim); p += [w, b]; p += list(batchnorm(hidden_dim))
    w, b = linear(hidden_dim, hidden_dim); p += [w, b]; p += list(batchnorm(hidden_dim))
    w, b = linear(hidden_dim, output_dim); p += [w, b]
    return p


def reference_forward(x, raw_params):
    (w1, b1, g1, be1, m1, v1,
     w2, b2, g2, be2, m2, v2,
     w3, b3, g3, be3, m3, v3,
     w4, b4) = raw_params
    h = x @ w1 + b1
    h = jnp.maximum(g1 * (h - m1) * lax.rsqrt(v1 + EPS) + be1, 0.0)
    h = h @ w2 + b2
    h = jnp.maximum(g2 * (h - m2) * lax.rsqrt(v2 + EPS) + be2, 0.0)
    h = h @ w3 + b3
    h = jnp.maximum(g3 * (h - m3) * lax.rsqrt(v3 + EPS) + be3, 0.0)
    return h @ w4 + b4


if __name__ == "__main__":
    # Small deterministic example (module defaults: hidden=256, output=2).
    B, INPUT_DIM, HIDDEN_DIM, OUTPUT_DIM = 50, 64, 256, 2

    key = jax.random.PRNGKey(0)
    kx, kp = jax.random.split(key)
    x = jax.random.normal(kx, (B, INPUT_DIM), jnp.float32)

    raw = init_params(kp, INPUT_DIM, HIDDEN_DIM, OUTPUT_DIM)
    prep = prepare_params(raw, weight_dtype=jnp.bfloat16)

    # tb is capped at ceil(B/2) -> grid=(2,) here: exercises the multi-tile
    # batch pipeline and a masked (ragged) final batch block.
    out = mlp_classifier_forward(x, prep, block_b=512)
    out = jax.block_until_ready(out)

    ref = reference_forward(x, raw)   # f32, unfused BN reference
    assert out.shape == (B, OUTPUT_DIM)
    # bf16 weights/activations -> loosened tolerance vs the f32 reference.
    assert jnp.allclose(out, ref, atol=3e-2, rtol=3e-2), "mismatch vs reference"

    # TODO(synk): training-mode BatchNorm (batch statistics) and active Dropout
    # are not implemented; this kernel reproduces eval/inference semantics.
    print("KERNEL_OK")
</pallas_src>

<mosaic_0001>
module attributes {stable_mosaic.version = 11 : i64} {
  func.func @mlp_kernel(%arg0: i32, %arg1: memref<32x64xf32, #tpu.memory_space<vmem>>, %arg2: memref<64x256xbf16, #tpu.memory_space<vmem>>, %arg3: memref<256x256xbf16, #tpu.memory_space<vmem>>, %arg4: memref<256x256xbf16, #tpu.memory_space<vmem>>, %arg5: memref<256x128xbf16, #tpu.memory_space<vmem>>, %arg6: memref<3x256xf32, #tpu.memory_space<vmem>>, %arg7: memref<3x256xf32, #tpu.memory_space<vmem>>, %arg8: memref<1x128xf32, #tpu.memory_space<vmem>>, %arg9: memref<32x2xf32, #tpu.memory_space<vmem>>) attributes {dimension_semantics = [#tpu.dimension_semantics<parallel>], iteration_bounds = array<i64: 2>, scalar_prefetch = 0 : i64, scratch_operands = 0 : i64, tpu.core_type = #tpu.core_type<tc>, window_params = [{transform_indices = @transform_0, window_bounds = array<i64: 32, 64>}, {pipeline_mode = #tpu.pipeline_mode<synchronous>, transform_indices = @transform_1, window_bounds = array<i64: 64, 256>}, {pipeline_mode = #tpu.pipeline_mode<synchronous>, transform_indices = @transform_2, window_bounds = array<i64: 256, 256>}, {pipeline_mode = #tpu.pipeline_mode<synchronous>, transform_indices = @transform_3, window_bounds = array<i64: 256, 256>}, {pipeline_mode = #tpu.pipeline_mode<synchronous>, transform_indices = @transform_4, window_bounds = array<i64: 256, 128>}, {pipeline_mode = #tpu.pipeline_mode<synchronous>, transform_indices = @transform_5, window_bounds = array<i64: 3, 256>}, {pipeline_mode = #tpu.pipeline_mode<synchronous>, transform_indices = @transform_6, window_bounds = array<i64: 3, 256>}, {pipeline_mode = #tpu.pipeline_mode<synchronous>, transform_indices = @transform_7, window_bounds = array<i64: 1, 128>}, {transform_indices = @transform_8, window_bounds = array<i64: 32, 2>}]} {
    %c0 = arith.constant 0 : index
    %c0_0 = arith.constant 0 : index
    %0 = vector.load %arg6[%c0, %c0_0] : memref<3x256xf32, #tpu.memory_space<vmem>>, vector<1x256xf32>
    %c1 = arith.constant 1 : index
    %c0_1 = arith.constant 0 : index
    %1 = vector.load %arg6[%c1, %c0_1] : memref<3x256xf32, #tpu.memory_space<vmem>>, vector<1x256xf32>
    %c2 = arith.constant 2 : index
    %c0_2 = arith.constant 0 : index
    %2 = vector.load %arg6[%c2, %c0_2] : memref<3x256xf32, #tpu.memory_space<vmem>>, vector<1x256xf32>
    %c0_3 = arith.constant 0 : index
    %c0_4 = arith.constant 0 : index
    %3 = vector.load %arg7[%c0_3, %c0_4] : memref<3x256xf32, #tpu.memory_space<vmem>>, vector<1x256xf32>
    %c1_5 = arith.constant 1 : index
    %c0_6 = arith.constant 0 : index
    %4 = vector.load %arg7[%c1_5, %c0_6] : memref<3x256xf32, #tpu.memory_space<vmem>>, vector<1x256xf32>
    %c2_7 = arith.constant 2 : index
    %c0_8 = arith.constant 0 : index
    %5 = vector.load %arg7[%c2_7, %c0_8] : memref<3x256xf32, #tpu.memory_space<vmem>>, vector<1x256xf32>
    %c0_9 = arith.constant 0 : index
    %c0_10 = arith.constant 0 : index
    %6 = vector.load %arg1[%c0_9, %c0_10] : memref<32x64xf32, #tpu.memory_space<vmem>>, vector<32x64xf32>
    %7 = arith.truncf %6 : vector<32x64xf32> to vector<32x64xbf16>
    %c0_11 = arith.constant 0 : index
    %c0_12 = arith.constant 0 : index
    %8 = vector.load %arg2[%c0_11, %c0_12] : memref<64x256xbf16, #tpu.memory_space<vmem>>, vector<64x256xbf16>
    %cst = arith.constant dense<0.000000e+00> : vector<32x256xf32>
    %9 = tpu.matmul %7, %8, %cst {dimension_numbers = #tpu.dot_dimension_numbers<[1], [0], [0], [1], [0, 0, 1, 1], [], []>} : vector<32x64xbf16>, vector<64x256xbf16>, vector<32x256xf32> -> vector<32x256xf32>
    %10 = vector.broadcast %0 : vector<1x256xf32> to vector<32x256xf32>
    %11 = arith.mulf %9, %10 : vector<32x256xf32>
    %12 = vector.broadcast %3 : vector<1x256xf32> to vector<32x256xf32>
    %13 = arith.addf %11, %12 : vector<32x256xf32>
    %cst_13 = arith.constant 0.000000e+00 : f32
    %14 = vector.broadcast %cst_13 : f32 to vector<32x256xf32>
    %15 = arith.maximumf %13, %14 : vector<32x256xf32>
    %16 = arith.truncf %15 : vector<32x256xf32> to vector<32x256xbf16>
    %c0_14 = arith.constant 0 : index
    %c0_15 = arith.constant 0 : index
    %17 = vector.load %arg3[%c0_14, %c0_15] : memref<256x256xbf16, #tpu.memory_space<vmem>>, vector<256x256xbf16>
    %cst_16 = arith.constant dense<0.000000e+00> : vector<32x256xf32>
    %18 = tpu.matmul %16, %17, %cst_16 {dimension_numbers = #tpu.dot_dimension_numbers<[1], [0], [0], [1], [0, 0, 1, 1], [], []>} : vector<32x256xbf16>, vector<256x256xbf16>, vector<32x256xf32> -> vector<32x256xf32>
    %19 = vector.broadcast %1 : vector<1x256xf32> to vector<32x256xf32>
    %20 = arith.mulf %18, %19 : vector<32x256xf32>
    %21 = vector.broadcast %4 : vector<1x256xf32> to vector<32x256xf32>
    %22 = arith.addf %20, %21 : vector<32x256xf32>
    %cst_17 = arith.constant 0.000000e+00 : f32
    %23 = vector.broadcast %cst_17 : f32 to vector<32x256xf32>
    %24 = arith.maximumf %22, %23 : vector<32x256xf32>
    %25 = arith.truncf %24 : vector<32x256xf32> to vector<32x256xbf16>
    %c0_18 = arith.constant 0 : index
    %c0_19 = arith.constant 0 : index
    %26 = vector.load %arg4[%c0_18, %c0_19] : memref<256x256xbf16, #tpu.memory_space<vmem>>, vector<256x256xbf16>
    %cst_20 = arith.constant dense<0.000000e+00> : vector<32x256xf32>
    %27 = tpu.matmul %25, %26, %cst_20 {dimension_numbers = #tpu.dot_dimension_numbers<[1], [0], [0], [1], [0, 0, 1, 1], [], []>} : vector<32x256xbf16>, vector<256x256xbf16>, vector<32x256xf32> -> vector<32x256xf32>
    %28 = vector.broadcast %2 : vector<1x256xf32> to vector<32x256xf32>
    %29 = arith.mulf %27, %28 : vector<32x256xf32>
    %30 = vector.broadcast %5 : vector<1x256xf32> to vector<32x256xf32>
    %31 = arith.addf %29, %30 : vector<32x256xf32>
    %cst_21 = arith.constant 0.000000e+00 : f32
    %32 = vector.broadcast %cst_21 : f32 to vector<32x256xf32>
    %33 = arith.maximumf %31, %32 : vector<32x256xf32>
    %34 = arith.truncf %33 : vector<32x256xf32> to vector<32x256xbf16>
    %c0_22 = arith.constant 0 : index
    %c0_23 = arith.constant 0 : index
    %35 = vector.load %arg5[%c0_22, %c0_23] : memref<256x128xbf16, #tpu.memory_space<vmem>>, vector<256x128xbf16>
    %cst_24 = arith.constant dense<0.000000e+00> : vector<32x128xf32>
    %36 = tpu.matmul %34, %35, %cst_24 {dimension_numbers = #tpu.dot_dimension_numbers<[1], [0], [0], [1], [0, 0, 1, 1], [], []>} : vector<32x256xbf16>, vector<256x128xbf16>, vector<32x128xf32> -> vector<32x128xf32>
    %c0_25 = arith.constant 0 : index
    %c0_26 = arith.constant 0 : index
    %37 = vector.load %arg8[%c0_25, %c0_26] : memref<1x128xf32, #tpu.memory_space<vmem>>, vector<1x128xf32>
    %38 = vector.broadcast %37 : vector<1x128xf32> to vector<32x128xf32>
    %39 = arith.addf %36, %38 : vector<32x128xf32>
    %40 = vector.extract_strided_slice %39 {offsets = [0, 0], sizes = [32, 2], strides = [1, 1]} : vector<32x128xf32> to vector<32x2xf32>
    %c0_27 = arith.constant 0 : index
    %c0_28 = arith.constant 0 : index
    %41 = vector.load %arg9[%c0_27, %c0_28] : memref<32x2xf32, #tpu.memory_space<vmem>>, vector<32x2xf32>
    tpu.vector_store %arg9[%c0_27, %c0_28], %40 {strides = array<i32>} : memref<32x2xf32, #tpu.memory_space<vmem>>, vector<32x2xf32>,
    return
  }
  func.func @transform_0(%arg0: i32) -> (i32, i32) {
    %c0_i32 = arith.constant 0 : i32
    %c0_i32_0 = arith.constant 0 : i32
    return %arg0, %c0_i32 : i32, i32
  }
  func.func @transform_1(%arg0: i32) -> (i32, i32) {
    %c0_i32 = arith.constant 0 : i32
    %c0_i32_0 = arith.constant 0 : i32
    %c0_i32_1 = arith.constant 0 : i32
    return %c0_i32, %c0_i32_0 : i32, i32
  }
  func.func @transform_2(%arg0: i32) -> (i32, i32) {
    %c0_i32 = arith.constant 0 : i32
    %c0_i32_0 = arith.constant 0 : i32
    %c0_i32_1 = arith.constant 0 : i32
    return %c0_i32, %c0_i32_0 : i32, i32
  }
  func.func @transform_3(%arg0: i32) -> (i32, i32) {
    %c0_i32 = arith.constant 0 : i32
    %c0_i32_0 = arith.constant 0 : i32
    %c0_i32_1 = arith.constant 0 : i32
    return %c0_i32, %c0_i32_0 : i32, i32
  }
  func.func @transform_4(%arg0: i32) -> (i32, i32) {
    %c0_i32 = arith.constant 0 : i32
    %c0_i32_0 = arith.constant 0 : i32
    %c0_i32_1 = arith.constant 0 : i32
    return %c0_i32, %c0_i32_0 : i32, i32
  }
  func.func @transform_5(%arg0: i32) -> (i32, i32) {
    %c0_i32 = arith.constant 0 : i32
    %c0_i32_0 = arith.constant 0 : i32
    %c0_i32_1 = arith.constant 0 : i32
    return %c0_i32, %c0_i32_0 : i32, i32
  }
  func.func @transform_6(%arg0: i32) -> (i32, i32) {
    %c0_i32 = arith.constant 0 : i32
    %c0_i32_0 = arith.constant 0 : i32
    %c0_i32_1 = arith.constant 0 : i32
    return %c0_i32, %c0_i32_0 : i32, i32
  }
  func.func @transform_7(%arg0: i32) -> (i32, i32) {
    %c0_i32 = arith.constant 0 : i32
    %c0_i32_0 = arith.constant 0 : i32
    %c0_i32_1 = arith.constant 0 : i32
    return %c0_i32, %c0_i32_0 : i32, i32
  }
  func.func @transform_8(%arg0: i32) -> (i32, i32) {
    %c0_i32 = arith.constant 0 : i32
    %c0_i32_0 = arith.constant 0 : i32
    return %arg0, %c0_i32 : i32, i32
  }
}

</mosaic_0001>

<llo_original>
// kernel: tpu_custom_call.1
$region0: #{tpu_custom_call.1}
  #allocation0 [shape = 'u32[]', space=smem, size = 0x4, offset = 0x4, fixed_abs, tag = 'smem constant byte address 0x4 - core index']
  #allocation1 [shape = 'u32[144,128]{1,0:T(1,128)}', space=vmem, size = 0x12000, scoped, tag = 'internal scratch']
  %s0 = inlined_call_operand.hbm [shape: f32[50,64], index: 0, kind: input, shape index: {}]
  %s1 = inlined_call_operand.hbm [shape: bf16[64,256], index: 1, kind: input, shape index: {}]
  %s2 = inlined_call_operand.hbm [shape: bf16[256,256], index: 2, kind: input, shape index: {}]
  %s3 = inlined_call_operand.hbm [shape: bf16[256,256], index: 3, kind: input, shape index: {}]
  %s4 = inlined_call_operand.hbm [shape: bf16[256,128], index: 4, kind: input, shape index: {}]
  %s5 = inlined_call_operand.vmem [shape: f32[3,256], index: 5, kind: input, shape index: {}]
  %s6 = inlined_call_operand.vmem [shape: f32[3,256], index: 6, kind: input, shape index: {}]
  %s7 = inlined_call_operand.vmem [shape: f32[1,128], index: 7, kind: input, shape index: {}]
  %s8 = inlined_call_operand.vmem [shape: f32[50,2], index: 8, kind: output, shape index: {}]
  %s9 = sld [smem:[#allocation0]]
  $region133: #{tpu_custom_call.1} parent=0
    _
  %s11 = ssub.s32 1, %s9
  %s12 = scalar_select 0, %s11, %s9
  $region1: #{tpu_custom_call.1} parent=0
    #allocation2 [shape = 'u8[32768]{0}', space=vmem, size = 0x8000, scoped, tag = 'input window, operand 0']
    #allocation3 [shape = 's32[2]{0}', space=sflag, size = 0x8, scoped, tag = 'scoped memory for tpu_custom_call.1']
    #allocation4 [shape = 'u8[32768]{0}', space=vmem, size = 0x8000, scoped, tag = 'input window, operand 1, single buffered']
    #allocation5 [shape = 's32[1]{0}', space=sflag, size = 0x4, scoped, tag = 'scoped memory for tpu_custom_call.1']
    #allocation6 [shape = 'u8[131072]{0}', space=vmem, size = 0x20000, scoped, tag = 'input window, operand 2, single buffered']
    #allocation7 [shape = 'u8[131072]{0}', space=vmem, size = 0x20000, scoped, tag = 'input window, operand 3, single buffered']
    #allocation8 [shape = 's32[1]{0}', space=sflag, size = 0x4, scoped, tag = 'scoped memory for tpu_custom_call.1']
    #allocation9 [shape = 'u8[65536]{0}', space=vmem, size = 0x10000, scoped, tag = 'input window, operand 4, single buffered']
    #allocation10 [shape = 'u8[32768]{0}', space=vmem, size = 0x8000, scoped, tag = 'output window, operand 0']
    %13 = vsyncpa [#allocation3], 0
    %s14 = scalar_lea.sflag [#allocation3], 1
    %15 = vsyncpa %s14, 0
    %16 = vsyncpa [#allocation5], 0
    %17 = vsyncpa [#allocation8], 0
    loop: start=0, step=1, limit=4
    $region2: #{tpu_custom_call.1} parent=1 // loop_pre_header
      _
    $region3: #{tpu_custom_call.1} parent=1 // loop_header
      %s19 = sphi 0, %s23
      %p20 = scmp.ge.s32.totalorder %s19, 4
      %s29 = sphi 0, %s31
      %s32 = sphi 0, %s29
      %s33 = sphi 0, %s32
      %s49 = sphi 0, %s33
      %s53 = sphi 0, %s53
      %s55 = sphi 0, %s53
      %s56 = sphi 0, %s55
      %s70 = sphi 0, %s56
      %s74 = sphi 0, %s74
      %s76 = sphi 0, %s74
      %s77 = sphi 0, %s76
      %s91 = sphi 0, %s77
      %s95 = sphi 0, %s95
      %s97 = sphi 0, %s95
      %s98 = sphi 0, %s97
      %s112 = sphi 0, %s98
      %s116 = sphi 0, %s116
      %s118 = sphi 0, %s116
      %s119 = sphi 0, %s118
      %s133 = sphi 0, %s119
      %s137 = sphi 0, %s137
      %s139 = sphi 0, %s137
      %s140 = sphi 0, %s139
      %s154 = sphi 0, %s140
      %s158 = sphi 0, %s158
      %s160 = sphi 0, %s158
      %s161 = sphi 0, %s160
      %s175 = sphi 0, %s161
      %s179 = sphi 0, %s179
      %s181 = sphi 0, %s179
      %s182 = sphi 0, %s181
      %s196 = sphi 0, %s182
      %s202 = sphi 0, %s204
      %s205 = sphi 0, %s202
      %s206 = sphi 0, %s205
      %s222 = sphi 0, %s206
    $region4: #{tpu_custom_call.1} parent=1 // loop_header_branch
      %22 = sbr.rel (%p20) target = $region8
    $region5: #{tpu_custom_call.1} parent=1 // loop_body
      %s24 = ssub.s32 %s19, 1
      %s25 = ssub.s32 %s19, 2
      %s26 = sadd.s32 %s19, 1
      %s27 = ssub.s32 %s19, %s26
      %p28 = scmp.eq.s32.totalorder %s27, 0
      %s30 = sadd.s32 %s29, 1
      %s31 = scalar_select %p28, %s29, %s30
      %p34 = pneg %p28
      %p35 = scmp.eq.s32.totalorder %s19, 1
      %p36 = por %p34, %p35
      %p37 = scmp.ne.s32.totalorder %s29, %s32
      %p38 = scmp.eq.s32.totalorder %s19, 0
      %p39 = por %p37, %p38
      %p40 = scmp.ne.s32.totalorder %s29, %s32
      %p41 = scmp.eq.s32.totalorder %s24, 1
      %p42 = por %p40, %p41
      %p43 = scmp.ne.s32.totalorder %s32, %s33
      %p44 = scmp.eq.s32.totalorder %s24, 0
      %p45 = por %p43, %p44
      %p46 = scmp.ne.s32.totalorder %s32, %s33
      %p47 = scmp.eq.s32.totalorder %s25, 1
      %p48 = por %p46, %p47
      %p50 = scmp.ne.s32.totalorder %s33, %s49
      %p51 = scmp.eq.s32.totalorder %s25, 0
      %p52 = por %p50, %p51
      %s54 = sadd.s32 %s53, 1
      %p57 = scmp.eq.s32.totalorder %s19, 1
      %p58 = scmp.ne.s32.totalorder %s53, %s55
      %p59 = scmp.eq.s32.totalorder %s19, 0
      %p60 = por %p58, %p59
      %p61 = scmp.ne.s32.totalorder %s53, %s55
      %p62 = scmp.eq.s32.totalorder %s24, 1
      %p63 = por %p61, %p62
      %p64 = scmp.ne.s32.totalorder %s55, %s56
      %p65 = scmp.eq.s32.totalorder %s24, 0
      %p66 = por %p64, %p65
      %p67 = scmp.ne.s32.totalorder %s55, %s56
      %p68 = scmp.eq.s32.totalorder %s25, 1
      %p69 = por %p67, %p68
      %p71 = scmp.ne.s32.totalorder %s56, %s70
      %p72 = scmp.eq.s32.totalorder %s25, 0
      %p73 = por %p71, %p72
      %s75 = sadd.s32 %s74, 1
      %p78 = scmp.eq.s32.totalorder %s19, 1
      %p79 = scmp.ne.s32.totalorder %s74, %s76
      %p80 = scmp.eq.s32.totalorder %s19, 0
      %p81 = por %p79, %p80
      %p82 = scmp.ne.s32.totalorder %s74, %s76
      %p83 = scmp.eq.s32.totalorder %s24, 1
      %p84 = por %p82, %p83
      %p85 = scmp.ne.s32.totalorder %s76, %s77
      %p86 = scmp.eq.s32.totalorder %s24, 0
      %p87 = por %p85, %p86
      %p88 = scmp.ne.s32.totalorder %s76, %s77
      %p89 = scmp.eq.s32.totalorder %s25, 1
      %p90 = por %p88, %p89
      %p92 = scmp.ne.s32.totalorder %s77, %s91
      %p93 = scmp.eq.s32.totalorder %s25, 0
      %p94 = por %p92, %p93
      %s96 = sadd.s32 %s95, 1
      %p99 = scmp.eq.s32.totalorder %s19, 1
      %p100 = scmp.ne.s32.totalorder %s95, %s97
      %p101 = scmp.eq.s32.totalorder %s19, 0
      %p102 = por %p100, %p101
      %p103 = scmp.ne.s32.totalorder %s95, %s97
      %p104 = scmp.eq.s32.totalorder %s24, 1
      %p105 = por %p103, %p104
      %p106 = scmp.ne.s32.totalorder %s97, %s98
      %p107 = scmp.eq.s32.totalorder %s24, 0
      %p108 = por %p106, %p107
      %p109 = scmp.ne.s32.totalorder %s97, %s98
      %p110 = scmp.eq.s32.totalorder %s25, 1
      %p111 = por %p109, %p110
      %p113 = scmp.ne.s32.totalorder %s98, %s112
      %p114 = scmp.eq.s32.totalorder %s25, 0
      %p115 = por %p113, %p114
      %s117 = sadd.s32 %s116, 1
      %p120 = scmp.eq.s32.totalorder %s19, 1
      %p121 = scmp.ne.s32.totalorder %s116, %s118
      %p122 = scmp.eq.s32.totalorder %s19, 0
      %p123 = por %p121, %p122
      %p124 = scmp.ne.s32.totalorder %s116, %s118
      %p125 = scmp.eq.s32.totalorder %s24, 1
      %p126 = por %p124, %p125
      %p127 = scmp.ne.s32.totalorder %s118, %s119
      %p128 = scmp.eq.s32.totalorder %s24, 0
      %p129 = por %p127, %p128
      %p130 = scmp.ne.s32.totalorder %s118, %s119
      %p131 = scmp.eq.s32.totalorder %s25, 1
      %p132 = por %p130, %p131
      %p134 = scmp.ne.s32.totalorder %s119, %s133
      %p135 = scmp.eq.s32.totalorder %s25, 0
      %p136 = por %p134, %p135
      %s138 = sadd.s32 %s137, 1
      %p141 = scmp.eq.s32.totalorder %s19, 1
      %p142 = scmp.ne.s32.totalorder %s137, %s139
      %p143 = scmp.eq.s32.totalorder %s19, 0
      %p144 = por %p142, %p143
      %p145 = scmp.ne.s32.totalorder %s137, %s139
      %p146 = scmp.eq.s32.totalorder %s24, 1
      %p147 = por %p145, %p146
      %p148 = scmp.ne.s32.totalorder %s139, %s140
      %p149 = scmp.eq.s32.totalorder %s24, 0
      %p150 = por %p148, %p149
      %p151 = scmp.ne.s32.totalorder %s139, %s140
      %p152 = scmp.eq.s32.totalorder %s25, 1
      %p153 = por %p151, %p152
      %p155 = scmp.ne.s32.totalorder %s140, %s154
      %p156 = scmp.eq.s32.totalorder %s25, 0
      %p157 = por %p155, %p156
      %s159 = sadd.s32 %s158, 1
      %p162 = scmp.eq.s32.totalorder %s19, 1
      %p163 = scmp.ne.s32.totalorder %s158, %s160
      %p164 = scmp.eq.s32.totalorder %s19, 0
      %p165 = por %p163, %p164
      %p166 = scmp.ne.s32.totalorder %s158, %s160
      %p167 = scmp.eq.s32.totalorder %s24, 1
      %p168 = por %p166, %p167
      %p169 = scmp.ne.s32.totalorder %s160, %s161
      %p170 = scmp.eq.s32.totalorder %s24, 0
      %p171 = por %p169, %p170
      %p172 = scmp.ne.s32.totalorder %s160, %s161
      %p173 = scmp.eq.s32.totalorder %s25, 1
      %p174 = por %p172, %p173
      %p176 = scmp.ne.s32.totalorder %s161, %s175
      %p177 = scmp.eq.s32.totalorder %s25, 0
      %p178 = por %p176, %p177
      %s180 = sadd.s32 %s179, 1
      %p183 = scmp.eq.s32.totalorder %s19, 1
      %p184 = scmp.ne.s32.totalorder %s179, %s181
      %p185 = scmp.eq.s32.totalorder %s19, 0
      %p186 = por %p184, %p185
      %p187 = scmp.ne.s32.totalorder %s179, %s181
      %p188 = scmp.eq.s32.totalorder %s24, 1
      %p189 = por %p187, %p188
      %p190 = scmp.ne.s32.totalorder %s181, %s182
      %p191 = scmp.eq.s32.totalorder %s24, 0
      %p192 = por %p190, %p191
      %p193 = scmp.ne.s32.totalorder %s181, %s182
      %p194 = scmp.eq.s32.totalorder %s25, 1
      %p195 = por %p193, %p194
      %p197 = scmp.ne.s32.totalorder %s182, %s196
      %p198 = scmp.eq.s32.totalorder %s25, 0
      %p199 = por %p197, %p198
      %s200 = ssub.s32 %s19, %s26
      %p201 = scmp.eq.s32.totalorder %s200, 0
      %s203 = sadd.s32 %s202, 1
      %s204 = scalar_select %p201, %s202, %s203
      %p207 = pneg %p201
      %p208 = scmp.eq.s32.totalorder %s19, 1
      %p209 = por %p207, %p208
      %p210 = scmp.ne.s32.totalorder %s202, %s205
      %p211 = scmp.eq.s32.totalorder %s19, 0
      %p212 = por %p210, %p211
      %p213 = scmp.ne.s32.totalorder %s202, %s205
      %p214 = scmp.eq.s32.totalorder %s24, 1
      %p215 = por %p213, %p214
      %p216 = scmp.ne.s32.totalorder %s205, %s206
      %p217 = scmp.eq.s32.totalorder %s24, 0
      %p218 = por %p216, %p217
      %p219 = scmp.ne.s32.totalorder %s205, %s206
      %p220 = scmp.eq.s32.totalorder %s25, 1
      %p221 = por %p219, %p220
      %p223 = scmp.ne.s32.totalorder %s206, %s222
      %p224 = scmp.eq.s32.totalorder %s25, 0
      %p225 = por %p223, %p224
      %p226 = scmp.le.s32.totalorder 1, %s19
      %p227 = scmp.lt.s32.totalorder %s19, 3
      %p228 = pnand %p226, %p227
      %p229 = pneg %p228
      // Predicated region
      $region9: #{tpu_custom_call.1} parent=5 // pred_check
        _
      $region10: #{tpu_custom_call.1} parent=5 // pred_check_branch
        %231 = sbr.rel (%p228) target = $region12
      $region11: #{tpu_custom_call.1} parent=5 // pred_region
        %s232 = ssub.s32 %s19, 1
        // Predicated region
        $region13: #{tpu_custom_call.1} parent=11 // pred_check
          %p233 = pneg %p66
        $region14: #{tpu_custom_call.1} parent=11 // pred_check_branch
          %235 = sbr.rel (%p233) target = $region16
        $region15: #{tpu_custom_call.1} parent=11 // pred_region
          %s237 = ssub.s32 1024, 1024
          %238 = vsyncadd [#allocation5], %s237
          %s239 = sshll.u32 [#allocation4], 4
          %s240 = int_to_ptr.vmem [resolvable:$true] %s239
          %245 = dma.hbm_to_vmem [thread:$0]  %s1, 1024, %s240, [#allocation5], 128, 128, 8
        $region16: #{tpu_custom_call.1} parent=11 // pred_fallthru
          _
        // Predicated region
        $region17: #{tpu_custom_call.1} parent=11 // pred_check
          %p246 = pneg %p87
        $region18: #{tpu_custom_call.1} parent=11 // pred_check_branch
          %248 = sbr.rel (%p246) target = $region20
        $region19: #{tpu_custom_call.1} parent=11 // pred_region
          %s250 = ssub.s32 4096, 4096
          %251 = vsyncadd [#allocation5], %s250
          %s252 = sshll.u32 [#allocation6], 4
          %s253 = int_to_ptr.vmem [resolvable:$true] %s252
          %258 = dma.hbm_to_vmem [thread:$0]  %s2, 4096, %s253, [#allocation5], 128, 128, 8
        $region20: #{tpu_custom_call.1} parent=11 // pred_fallthru
          _
        // Predicated region
        $region21: #{tpu_custom_call.1} parent=11 // pred_check
          %p259 = pneg %p108
        $region22: #{tpu_custom_call.1} parent=11 // pred_check_branch
          %261 = sbr.rel (%p259) target = $region24
        $region23: #{tpu_custom_call.1} parent=11 // pred_region
          %s263 = ssub.s32 4096, 4096
          %264 = vsyncadd [#allocation8], %s263
          %s265 = sshll.u32 [#allocation7], 4
          %s266 = int_to_ptr.vmem [resolvable:$true] %s265
          %271 = dma.hbm_to_vmem [thread:$0]  %s3, 4096, %s266, [#allocation8], 128, 128, 8
        $region24: #{tpu_custom_call.1} parent=11 // pred_fallthru
          _
        // Predicated region
        $region25: #{tpu_custom_call.1} parent=11 // pred_check
          %p272 = pneg %p129
        $region26: #{tpu_custom_call.1} parent=11 // pred_check_branch
          %274 = sbr.rel (%p272) target = $region28
        $region27: #{tpu_custom_call.1} parent=11 // pred_region
          %s276 = ssub.s32 2048, 2048
          %277 = vsyncadd [#allocation8], %s276
          %s278 = sshll.u32 [#allocation9], 4
          %s279 = int_to_ptr.vmem [resolvable:$true] %s278
          %284 = dma.hbm_to_vmem [thread:$0]  %s4, 2048, %s279, [#allocation8], 64, 64, 4
        $region28: #{tpu_custom_call.1} parent=11 // pred_fallthru
          _
        // Predicated region
        $region29: #{tpu_custom_call.1} parent=11 // pred_check
          %p285 = pneg %p150
        $region30: #{tpu_custom_call.1} parent=11 // pred_check_branch
          %287 = sbr.rel (%p285) target = $region32
        $region31: #{tpu_custom_call.1} parent=11 // pred_region
          _
        $region32: #{tpu_custom_call.1} parent=11 // pred_fallthru
          _
        // Predicated region
        $region33: #{tpu_custom_call.1} parent=11 // pred_check
          %p288 = pneg %p171
        $region34: #{tpu_custom_call.1} parent=11 // pred_check_branch
          %290 = sbr.rel (%p288) target = $region36
        $region35: #{tpu_custom_call.1} parent=11 // pred_region
          _
        $region36: #{tpu_custom_call.1} parent=11 // pred_fallthru
          _
        // Predicated region
        $region37: #{tpu_custom_call.1} parent=11 // pred_check
          %p291 = pneg %p192
        $region38: #{tpu_custom_call.1} parent=11 // pred_check_branch
          %293 = sbr.rel (%p291) target = $region40
        $region39: #{tpu_custom_call.1} parent=11 // pred_region
          _
        $region40: #{tpu_custom_call.1} parent=11 // pred_fallthru
          _
      $region12: #{tpu_custom_call.1} parent=5 // pred_fallthru
        _
      %p294 = scmp.lt.s32.totalorder %s19, 2
      // Predicated region
      $region41: #{tpu_custom_call.1} parent=5 // pred_check
        %p295 = pneg %p294
      $region42: #{tpu_custom_call.1} parent=5 // pred_check_branch
        %297 = sbr.rel (%p295) target = $region44
      $region43: #{tpu_custom_call.1} parent=5 // pred_region
        // Predicated region
        $region45: #{tpu_custom_call.1} parent=43 // pred_check
          %p298 = pneg %p39
        $region46: #{tpu_custom_call.1} parent=43 // pred_check_branch
          %300 = sbr.rel (%p298) target = $region48
        $region47: #{tpu_custom_call.1} parent=43 // pred_region
          %s301 = sand.u32 %s29, 1
          %s302 = scalar_lea.sflag [#allocation3], %s301
          %s303 = sand.u32 %s29, 1
          %s304 = smul.addr %s303, 32
          %s305 = scalar_lea.vmem [#allocation2], %s304
          %s306 = smul.u32 4, %s19
          %s307 = ssub.s32 7, %s306
          %p308 = scmp.lt.s32.totalorder %s307, 4
          %s309 = scalar_select %p308, %s307, 4
          %s310 = smul.u32 128, %s309
          %s312 = ssub.s32 512, %s310
          %313 = vsyncadd %s302, %s312
          %p314 = scmp.ne.s32.totalorder 0, %s310
          %s315 = smul.addr %s306, 128
          %s316 = scalar_lea.hbm %s0, %s315
          %s317 = smul.u32 8, %s309
          %s318 = sshll.u32 %s305, 4
          %s319 = int_to_ptr.vmem [resolvable:$true] %s318
          %s320 = sshll.u32 %s317, 4
          %324 = dma.hbm_to_vmem [thread:$0]  (%p314), %s316, %s320, %s319, %s302, 128, 128, 8
        $region48: #{tpu_custom_call.1} parent=43 // pred_fallthru
          _
      $region44: #{tpu_custom_call.1} parent=5 // pred_fallthru
        _
      %p325 = scmp.le.s32.totalorder 1, %s19
      %p326 = scmp.lt.s32.totalorder %s19, 3
      %p327 = pnand %p325, %p326
      %p328 = pneg %p327
      // Predicated region
      $region49: #{tpu_custom_call.1} parent=5 // pred_check
        _
      $region50: #{tpu_custom_call.1} parent=5 // pred_check_branch
        %330 = sbr.rel (%p327) target = $region52
      $region51: #{tpu_custom_call.1} parent=5 // pred_region
        %s331 = ssub.s32 %s19, 1
        %s332 = sand.u32 %s32, 1
        %s333 = scalar_lea.sflag [#allocation3], %s332
        %s334 = sand.u32 %s32, 1
        %s335 = smul.addr %s334, 32
        %s336 = scalar_lea.vmem [#allocation2], %s335
        // Predicated region
        $region53: #{tpu_custom_call.1} parent=51 // pred_check
          %p337 = pneg %p45
        $region54: #{tpu_custom_call.1} parent=51 // pred_check_branch
          %339 = sbr.rel (%p337) target = $region56
        $region55: #{tpu_custom_call.1} parent=51 // pred_region
          %340 = dma.done %s333, 512
        $region56: #{tpu_custom_call.1} parent=51 // pred_fallthru
          _
        // Predicated region
        $region57: #{tpu_custom_call.1} parent=51 // pred_check
          %p341 = pneg %p66
        $region58: #{tpu_custom_call.1} parent=51 // pred_check_branch
          %343 = sbr.rel (%p341) target = $region60
        $region59: #{tpu_custom_call.1} parent=51 // pred_region
          %344 = dma.done [#allocation5], 1024
        $region60: #{tpu_custom_call.1} parent=51 // pred_fallthru
          _
        // Predicated region
        $region61: #{tpu_custom_call.1} parent=51 // pred_check
          %p345 = pneg %p87
        $region62: #{tpu_custom_call.1} parent=51 // pred_check_branch
          %347 = sbr.rel (%p345) target = $region64
        $region63: #{tpu_custom_call.1} parent=51 // pred_region
          %348 = dma.done [#allocation5], 4096
        $region64: #{tpu_custom_call.1} parent=51 // pred_fallthru
          _
        // Predicated region
        $region65: #{tpu_custom_call.1} parent=51 // pred_check
          %p349 = pneg %p108
        $region66: #{tpu_custom_call.1} parent=51 // pred_check_branch
          %351 = sbr.rel (%p349) target = $region68
        $region67: #{tpu_custom_call.1} parent=51 // pred_region
          %352 = dma.done [#allocation8], 4096
        $region68: #{tpu_custom_call.1} parent=51 // pred_fallthru
          _
        // Predicated region
        $region69: #{tpu_custom_call.1} parent=51 // pred_check
          %p353 = pneg %p129
        $region70: #{tpu_custom_call.1} parent=51 // pred_check_branch
          %355 = sbr.rel (%p353) target = $region72
        $region71: #{tpu_custom_call.1} parent=51 // pred_region
          %356 = dma.done [#allocation8], 2048
        $region72: #{tpu_custom_call.1} parent=51 // pred_fallthru
          _
        %s357 = sand.u32 %s32, 1
        %s358 = scalar_lea.sflag [#allocation3], %s357
        %s359 = sand.u32 %s32, 1
        %s360 = smul.addr %s359, 32
        %s361 = scalar_lea.vmem [#allocation2], %s360
        %p362 = pneg %p45
        %p363 = pneg %p42
        %p364 = pneg %p66
        %p365 = pneg %p63
        %p366 = pneg %p87
        %p367 = pneg %p84
        %p368 = pneg %p108
        %p369 = pneg %p105
        %p370 = pneg %p129
        %p371 = pneg %p126
        %p372 = pneg %p150
        %p373 = pneg %p147
        %p374 = pneg %p171
        %p375 = pneg %p168
        %p376 = pneg %p192
        %p377 = pneg %p189
        %p378 = pneg %p218
        %p379 = pneg %p215
        %s380 = sand.u32 %s205, 1
        %s381 = sand.u32 %s205, 1
        %s382 = smul.addr %s381, 32
        %s383 = scalar_lea.vmem [#allocation10], %s382
        %s384 = smul.u32 4, %s24
        %s385 = ssub.s32 7, %s384
        %p386 = scmp.lt.s32.totalorder %s385, 4
        %s387 = scalar_select %p386, %s385, 4
        %s388 = smul.u32 128, %s387
        %s389 = smul.u32 4, %s24
        %s390 = ssub.s32 7, %s389
        %p391 = scmp.lt.s32.totalorder %s390, 4
        %s392 = scalar_select %p391, %s390, 4
        %s393 = smul.u32 128, %s392
        %v395 = vld [vmem:[%s5] ss:$4 sm:$0x3]
        %s396 = scalar_lea.vmem %s5, 1
        %v397 = vld [vmem:[%s396] ss:$4 sm:$0x3]
        %s398 = scalar_lea.vmem %s5, 2
        %v399 = vld [vmem:[%s398] ss:$4 sm:$0x3]
        %v400 = vld [vmem:[%s6] ss:$4 sm:$0x3]
        %s401 = scalar_lea.vmem %s6, 1
        %v402 = vld [vmem:[%s401] ss:$4 sm:$0x3]
        %s403 = scalar_lea.vmem %s6, 2
        %v404 = vld [vmem:[%s403] ss:$4 sm:$0x3]
        %v405 = vld [vmem:[%s336] sm:$0xff]
        %v406 = vld [vmem:[%s336 + $0x8] sm:$0xff]
        %v407 = vld [vmem:[%s336 + $0x10] sm:$0xff]
        %v408 = vld [vmem:[%s336 + $0x18] sm:$0xff]
        %v409 = vpack.c.bf16 %v406, %v405
        %v410 = vpack.c.bf16 %v408, %v407
        %v411 = vld [vmem:[#allocation4] sm:$0xff]
        %v412 = vld [vmem:[#allocation4 + $0x8] sm:$0xff]
        %v413 = vld [vmem:[#allocation4 + $0x10] sm:$0xff]
        %v414 = vld [vmem:[#allocation4 + $0x18] sm:$0xff]
        %v415 = vld [vmem:[#allocation4 + $0x20] sm:$0xff]
        %v416 = vld [vmem:[#allocation4 + $0x28] sm:$0xff]
        %v417 = vld [vmem:[#allocation4 + $0x30] sm:$0xff]
        %v418 = vld [vmem:[#allocation4 + $0x38] sm:$0xff]
        %v427 = vunpack.c.l.b16 %v411
        %v428 = vunpack.c.h.b16 %v411
        %v429 = vunpack.c.l.b16 %v412
        %v430 = vunpack.c.h.b16 %v412
        %v431 = vunpack.c.l.b16 %v413
        %v432 = vunpack.c.h.b16 %v413
        %v433 = vunpack.c.l.b16 %v414
        %v434 = vunpack.c.h.b16 %v414
        %v435 = vunpack.c.l.b16 %v415
        %v436 = vunpack.c.h.b16 %v415
        %v437 = vunpack.c.l.b16 %v416
        %v438 = vunpack.c.h.b16 %v416
        %v439 = vunpack.c.l.b16 %v417
        %v440 = vunpack.c.h.b16 %v417
        %v441 = vunpack.c.l.b16 %v418
        %v442 = vunpack.c.h.b16 %v418
        %v443 = vpack.c.b16 %v429, %v427
        %v444 = vpack.c.b16 %v430, %v428
        %v445 = vpack.c.b16 %v433, %v431
        %v446 = vpack.c.b16 %v434, %v432
        %v447 = vpack.c.b16 %v437, %v435
        %v448 = vpack.c.b16 %v438, %v436
        %v449 = vpack.c.b16 %v441, %v439
        %v450 = vpack.c.b16 %v442, %v440
        %vm459 = vcmask 523264
        %v461 = vsel %vm459, %v409, 0
        %v464 = vsel %vm459, %v410, 0
        %466 = vmatprep.subr.bf16.mxu0 %v444
        %467 = vmatpush1.bf16.msra.mxu0 %v443
        %468 = vmatprep.subr.bf16.mxu0 %v446
        %469 = vmatpush1.bf16.msra.mxu0 %v445
        %470 = vmatprep.subr.bf16.mxu0 %v448
        %471 = vmatpush1.bf16.msra.mxu0 %v447
        %472 = vmatprep.subr.bf16.mxu0 %v450
        %473 = vmatpush1.bf16.msra.mxu0 %v449
        %474 = vmatprep.subr.bf16.mxu0 0
        %475 = vmatpush1.bf16.msra.mxu0 0
        %476 = vmatprep.subr.bf16.mxu0 0
        %477 = vmatpush1.bf16.msra.mxu0 0
        %478 = vmatprep.subr.bf16.mxu0 0
        %479 = vmatpush1.bf16.msra.mxu0 0
        %480 = vmatprep.subr.bf16.mxu0 0
        %481 = vmatpush1.bf16.msra.mxu0 0
        %482 = vmatprep.subr.bf16.mxu0 0
        %483 = vmatpush1.bf16.msra.mxu0 0
        %484 = vmatprep.subr.bf16.mxu0 0
        %485 = vmatpush1.bf16.msra.mxu0 0
        %486 = vmatprep.subr.bf16.mxu0 0
        %487 = vmatpush1.bf16.msra.mxu0 0
        %488 = vmatprep.subr.bf16.mxu0 0
        %489 = vmatpush1.bf16.msra.mxu0 0
        %490 = vmatprep.subr.bf16.mxu0 0
        %491 = vmatpush1.bf16.msra.mxu0 0
        %492 = vmatprep.subr.bf16.mxu0 0
        %493 = vmatpush1.bf16.msra.mxu0 0
        %494 = vmatprep.subr.bf16.mxu0 0
        %495 = vmatpush1.bf16.msra.mxu0 0
        %496 = vmatprep.subr.bf16.mxu0 0
        %497 = vmatpush1.bf16.msra.mxu0 0
        %498 = vmatprep.mubr.bf16.mxu0 0
        %499 = vmatmul.mubr.bf16.gmra.mrb[0].mxu0 %v461
        %v500 = vpop.f32.mrb[0].mxu0
        %v501 = vadd.f32 0.0, %v500
        %v502 = vpop.f32.mrb[0].mxu0
        %v503 = vadd.f32 0.0, %v502
        %v504 = vpop.f32.mrb[0].mxu0
        %v505 = vadd.f32 0.0, %v504
        %v506 = vpop.f32.mrb[0].mxu0
        %v507 = vadd.f32 0.0, %v506
        %508 = vmatprep.mubr.bf16.mxu0 0
        %509 = vmatmul.mubr.bf16.gmra.mrb[0].mxu0 %v464
        %v510 = vpop.f32.mrb[0].mxu0
        %v511 = vadd.f32 0.0, %v510
        %v512 = vpop.f32.mrb[0].mxu0
        %v513 = vadd.f32 0.0, %v512
        %v514 = vpop.f32.mrb[0].mxu0
        %v515 = vadd.f32 0.0, %v514
        %v516 = vpop.f32.mrb[0].mxu0
        %v517 = vadd.f32 0.0, %v516
        %518 = vdwg.mxu0
        %v520 = vlaneseq
        %v521 = vshrl.u32 %v520, 7
        %v522 = vsub.s32 0, %v521
        %v523 = vrot.slane %v395, %v522
        %v524 = vlaneseq
        %v525 = vshrl.u32 %v524, 7
        %v526 = vsub.s32 1, %v525
        %v527 = vrot.slane %v395, %v526
        %v530 = vmul.f32 %v501, %v523
        %v531 = vmul.f32 %v503, %v527
        %v532 = vmul.f32 %v505, %v523
        %v533 = vmul.f32 %v507, %v527
        %v534 = vmul.f32 %v511, %v523
        %v535 = vmul.f32 %v513, %v527
        %v536 = vmul.f32 %v515, %v523
        %v537 = vmul.f32 %v517, %v527
        %v539 = vlaneseq
        %v540 = vshrl.u32 %v539, 7
        %v541 = vsub.s32 0, %v540
        %v542 = vrot.slane %v400, %v541
        %v543 = vlaneseq
        %v544 = vshrl.u32 %v543, 7
        %v545 = vsub.s32 1, %v544
        %v546 = vrot.slane %v400, %v545
        %v549 = vadd.f32 %v530, %v542
        %v550 = vadd.f32 %v531, %v546
        %v551 = vadd.f32 %v532, %v542
        %v552 = vadd.f32 %v533, %v546
        %v553 = vadd.f32 %v534, %v542
        %v554 = vadd.f32 %v535, %v546
        %v555 = vadd.f32 %v536, %v542
        %v556 = vadd.f32 %v537, %v546
        %v557 = vmax.f32 %v549, 0.0
        %v558 = vmax.f32 %v550, 0.0
        %v559 = vmax.f32 %v551, 0.0
        %v560 = vmax.f32 %v552, 0.0
        %v561 = vmax.f32 %v553, 0.0
        %v562 = vmax.f32 %v554, 0.0
        %v563 = vmax.f32 %v555, 0.0
        %v564 = vmax.f32 %v556, 0.0
        %v565 = vpack.c.bf16 %v559, %v557
        %v566 = vpack.c.bf16 %v560, %v558
        %v567 = vpack.c.bf16 %v563, %v561
        %v568 = vpack.c.bf16 %v564, %v562
        %v569 = vld [vmem:[#allocation6] sm:$0xff]
        %v570 = vld [vmem:[#allocation6 + $0x8] sm:$0xff]
        %v571 = vld [vmem:[#allocation6 + $0x10] sm:$0xff]
        %v572 = vld [vmem:[#allocation6 + $0x18] sm:$0xff]
        %v573 = vld [vmem:[#allocation6 + $0x20] sm:$0xff]
        %v574 = vld [vmem:[#allocation6 + $0x28] sm:$0xff]
        %v575 = vld [vmem:[#allocation6 + $0x30] sm:$0xff]
        %v576 = vld [vmem:[#allocation6 + $0x38] sm:$0xff]
        %v577 = vld [vmem:[#allocation6 + $0x40] sm:$0xff]
        %v578 = vld [vmem:[#allocation6 + $0x48] sm:$0xff]
        %v579 = vld [vmem:[#allocation6 + $0x50] sm:$0xff]
        %v580 = vld [vmem:[#allocation6 + $0x58] sm:$0xff]
        %v581 = vld [vmem:[#allocation6 + $0x60] sm:$0xff]
        %v582 = vld [vmem:[#allocation6 + $0x68] sm:$0xff]
        %v583 = vld [vmem:[#allocation6 + $0x70] sm:$0xff]
        %v584 = vld [vmem:[#allocation6 + $0x78] sm:$0xff]
        %v585 = vld [vmem:[#allocation6 + $0x80] sm:$0xff]
        %v586 = vld [vmem:[#allocation6 + $0x88] sm:$0xff]
        %v587 = vld [vmem:[#allocation6 + $0x90] sm:$0xff]
        %v588 = vld [vmem:[#allocation6 + $0x98] sm:$0xff]
        %v589 = vld [vmem:[#allocation6 + $0xa0] sm:$0xff]
        %v590 = vld [vmem:[#allocation6 + $0xa8] sm:$0xff]
        %v591 = vld [vmem:[#allocation6 + $0xb0] sm:$0xff]
        %v592 = vld [vmem:[#allocation6 + $0xb8] sm:$0xff]
        %v593 = vld [vmem:[#allocation6 + $0xc0] sm:$0xff]
        %v594 = vld [vmem:[#allocation6 + $0xc8] sm:$0xff]
        %v595 = vld [vmem:[#allocation6 + $0xd0] sm:$0xff]
        %v596 = vld [vmem:[#allocation6 + $0xd8] sm:$0xff]
        %v597 = vld [vmem:[#allocation6 + $0xe0] sm:$0xff]
        %v598 = vld [vmem:[#allocation6 + $0xe8] sm:$0xff]
        %v599 = vld [vmem:[#allocation6 + $0xf0] sm:$0xff]
        %v600 = vld [vmem:[#allocation6 + $0xf8] sm:$0xff]
        %v633 = vunpack.c.l.b16 %v569
        %v634 = vunpack.c.h.b16 %v569
        %v635 = vunpack.c.l.b16 %v570
        %v636 = vunpack.c.h.b16 %v570
        %v637 = vunpack.c.l.b16 %v571
        %v638 = vunpack.c.h.b16 %v571
        %v639 = vunpack.c.l.b16 %v572
        %v640 = vunpack.c.h.b16 %v572
        %v641 = vunpack.c.l.b16 %v573
        %v642 = vunpack.c.h.b16 %v573
        %v643 = vunpack.c.l.b16 %v574
        %v644 = vunpack.c.h.b16 %v574
        %v645 = vunpack.c.l.b16 %v575
        %v646 = vunpack.c.h.b16 %v575
        %v647 = vunpack.c.l.b16 %v576
        %v648 = vunpack.c.h.b16 %v576
        %v649 = vunpack.c.l.b16 %v577
        %v650 = vunpack.c.h.b16 %v577
        %v651 = vunpack.c.l.b16 %v578
        %v652 = vunpack.c.h.b16 %v578
        %v653 = vunpack.c.l.b16 %v579
        %v654 = vunpack.c.h.b16 %v579
        %v655 = vunpack.c.l.b16 %v580
        %v656 = vunpack.c.h.b16 %v580
        %v657 = vunpack.c.l.b16 %v581
        %v658 = vunpack.c.h.b16 %v581
        %v659 = vunpack.c.l.b16 %v582
        %v660 = vunpack.c.h.b16 %v582
        %v661 = vunpack.c.l.b16 %v583
        %v662 = vunpack.c.h.b16 %v583
        %v663 = vunpack.c.l.b16 %v584
        %v664 = vunpack.c.h.b16 %v584
        %v665 = vunpack.c.l.b16 %v585
        %v666 = vunpack.c.h.b16 %v585
        %v667 = vunpack.c.l.b16 %v586
        %v668 = vunpack.c.h.b16 %v586
        %v669 = vunpack.c.l.b16 %v587
        %v670 = vunpack.c.h.b16 %v587
        %v671 = vunpack.c.l.b16 %v588
        %v672 = vunpack.c.h.b16 %v588
        %v673 = vunpack.c.l.b16 %v589
        %v674 = vunpack.c.h.b16 %v589
        %v675 = vunpack.c.l.b16 %v590
        %v676 = vunpack.c.h.b16 %v590
        %v677 = vunpack.c.l.b16 %v591
        %v678 = vunpack.c.h.b16 %v591
        %v679 = vunpack.c.l.b16 %v592
        %v680 = vunpack.c.h.b16 %v592
        %v681 = vunpack.c.l.b16 %v593
        %v682 = vunpack.c.h.b16 %v593
        %v683 = vunpack.c.l.b16 %v594
        %v684 = vunpack.c.h.b16 %v594
        %v685 = vunpack.c.l.b16 %v595
        %v686 = vunpack.c.h.b16 %v595
        %v687 = vunpack.c.l.b16 %v596
        %v688 = vunpack.c.h.b16 %v596
        %v689 = vunpack.c.l.b16 %v597
        %v690 = vunpack.c.h.b16 %v597
        %v691 = vunpack.c.l.b16 %v598
        %v692 = vunpack.c.h.b16 %v598
        %v693 = vunpack.c.l.b16 %v599
        %v694 = vunpack.c.h.b16 %v599
        %v695 = vunpack.c.l.b16 %v600
        %v696 = vunpack.c.h.b16 %v600
        %v697 = vpack.c.b16 %v635, %v633
        %v698 = vpack.c.b16 %v636, %v634
        %v699 = vpack.c.b16 %v639, %v637
        %v700 = vpack.c.b16 %v640, %v638
        %v701 = vpack.c.b16 %v643, %v641
        %v702 = vpack.c.b16 %v644, %v642
        %v703 = vpack.c.b16 %v647, %v645
        %v704 = vpack.c.b16 %v648, %v646
        %v705 = vpack.c.b16 %v651, %v649
        %v706 = vpack.c.b16 %v652, %v650
        %v707 = vpack.c.b16 %v655, %v653
        %v708 = vpack.c.b16 %v656, %v654
        %v709 = vpack.c.b16 %v659, %v657
        %v710 = vpack.c.b16 %v660, %v658
        %v711 = vpack.c.b16 %v663, %v661
        %v712 = vpack.c.b16 %v664, %v662
        %v713 = vpack.c.b16 %v667, %v665
        %v714 = vpack.c.b16 %v668, %v666
        %v715 = vpack.c.b16 %v671, %v669
        %v716 = vpack.c.b16 %v672, %v670
        %v717 = vpack.c.b16 %v675, %v673
        %v718 = vpack.c.b16 %v676, %v674
        %v719 = vpack.c.b16 %v679, %v677
        %v720 = vpack.c.b16 %v680, %v678
        %v721 = vpack.c.b16 %v683, %v681
        %v722 = vpack.c.b16 %v684, %v682
        %v723 = vpack.c.b16 %v687, %v685
        %v724 = vpack.c.b16 %v688, %v686
        %v725 = vpack.c.b16 %v691, %v689
        %v726 = vpack.c.b16 %v692, %v690
        %v727 = vpack.c.b16 %v695, %v693
        %v728 = vpack.c.b16 %v696, %v694
        %761 = vmatprep.subr.bf16.mxu0 %v698
        %762 = vmatpush1.bf16.msra.mxu0 %v697
        %763 = vmatprep.subr.bf16.mxu0 %v700
        %764 = vmatpush1.bf16.msra.mxu0 %v699
        %765 = vmatprep.subr.bf16.mxu0 %v702
        %766 = vmatpush1.bf16.msra.mxu0 %v701
        %767 = vmatprep.subr.bf16.mxu0 %v704
        %768 = vmatpush1.bf16.msra.mxu0 %v703
        %769 = vmatprep.subr.bf16.mxu0 %v706
        %770 = vmatpush1.bf16.msra.mxu0 %v705
        %771 = vmatprep.subr.bf16.mxu0 %v708
        %772 = vmatpush1.bf16.msra.mxu0 %v707
        %773 = vmatprep.subr.bf16.mxu0 %v710
        %774 = vmatpush1.bf16.msra.mxu0 %v709
        %775 = vmatprep.subr.bf16.mxu0 %v712
        %776 = vmatpush1.bf16.msra.mxu0 %v711
        %777 = vmatprep.subr.bf16.mxu0 %v714
        %778 = vmatpush1.bf16.msra.mxu0 %v713
        %779 = vmatprep.subr.bf16.mxu0 %v716
        %780 = vmatpush1.bf16.msra.mxu0 %v715
        %781 = vmatprep.subr.bf16.mxu0 %v718
        %782 = vmatpush1.bf16.msra.mxu0 %v717
        %783 = vmatprep.subr.bf16.mxu0 %v720
        %784 = vmatpush1.bf16.msra.mxu0 %v719
        %785 = vmatprep.subr.bf16.mxu0 %v722
        %786 = vmatpush1.bf16.msra.mxu0 %v721
        %787 = vmatprep.subr.bf16.mxu0 %v724
        %788 = vmatpush1.bf16.msra.mxu0 %v723
        %789 = vmatprep.subr.bf16.mxu0 %v726
        %790 = vmatpush1.bf16.msra.mxu0 %v725
        %791 = vmatprep.subr.bf16.mxu0 %v728
        %792 = vmatpush1.bf16.msra.mxu0 %v727
        %793 = vmatprep.mubr.bf16.mxu0 %v566
        %794 = vmatmul.mubr.bf16.gmra.mrb[0].mxu0 %v565
        %v795 = vpop.f32.mrb[0].mxu0
        %v796 = vadd.f32 0.0, %v795
        %v797 = vpop.f32.mrb[0].mxu0
        %v798 = vadd.f32 0.0, %v797
        %v799 = vpop.f32.mrb[0].mxu0
        %v800 = vadd.f32 0.0, %v799
        %v801 = vpop.f32.mrb[0].mxu0
        %v802 = vadd.f32 0.0, %v801
        %803 = vmatprep.mubr.bf16.mxu0 %v568
        %804 = vmatmul.mubr.bf16.gmra.mrb[0].mxu0 %v567
        %v805 = vpop.f32.mrb[0].mxu0
        %v806 = vadd.f32 0.0, %v805
        %v807 = vpop.f32.mrb[0].mxu0
        %v808 = vadd.f32 0.0, %v807
        %v809 = vpop.f32.mrb[0].mxu0
        %v810 = vadd.f32 0.0, %v809
        %v811 = vpop.f32.mrb[0].mxu0
        %v812 = vadd.f32 0.0, %v811
        %813 = vdwg.mxu0
        %v815 = vlaneseq
        %v816 = vshrl.u32 %v815, 7
        %v817 = vsub.s32 0, %v816
        %v818 = vrot.slane %v397, %v817
        %v819 = vlaneseq
        %v820 = vshrl.u32 %v819, 7
        %v821 = vsub.s32 1, %v820
        %v822 = vrot.slane %v397, %v821
        %v825 = vmul.f32 %v796, %v818
        %v826 = vmul.f32 %v798, %v822
        %v827 = vmul.f32 %v800, %v818
        %v828 = vmul.f32 %v802, %v822
        %v829 = vmul.f32 %v806, %v818
        %v830 = vmul.f32 %v808, %v822
        %v831 = vmul.f32 %v810, %v818
        %v832 = vmul.f32 %v812, %v822
        %v834 = vlaneseq
        %v835 = vshrl.u32 %v834, 7
        %v836 = vsub.s32 0, %v835
        %v837 = vrot.slane %v402, %v836
        %v838 = vlaneseq
        %v839 = vshrl.u32 %v838, 7
        %v840 = vsub.s32 1, %v839
        %v841 = vrot.slane %v402, %v840
        %v844 = vadd.f32 %v825, %v837
        %v845 = vadd.f32 %v826, %v841
        %v846 = vadd.f32 %v827, %v837
        %v847 = vadd.f32 %v828, %v841
        %v848 = vadd.f32 %v829, %v837
        %v849 = vadd.f32 %v830, %v841
        %v850 = vadd.f32 %v831, %v837
        %v851 = vadd.f32 %v832, %v841
        %v852 = vmax.f32 %v844, 0.0
        %v853 = vmax.f32 %v845, 0.0
        %v854 = vmax.f32 %v846, 0.0
        %v855 = vmax.f32 %v847, 0.0
        %v856 = vmax.f32 %v848, 0.0
        %v857 = vmax.f32 %v849, 0.0
        %v858 = vmax.f32 %v850, 0.0
        %v859 = vmax.f32 %v851, 0.0
        %v860 = vpack.c.bf16 %v854, %v852
        %v861 = vpack.c.bf16 %v855, %v853
        %v862 = vpack.c.bf16 %v858, %v856
        %v863 = vpack.c.bf16 %v859, %v857
        %v864 = vld [vmem:[#allocation7] sm:$0xff]
        %v865 = vld [vmem:[#allocation7 + $0x8] sm:$0xff]
        %v866 = vld [vmem:[#allocation7 + $0x10] sm:$0xff]
        %v867 = vld [vmem:[#allocation7 + $0x18] sm:$0xff]
        %v868 = vld [vmem:[#allocation7 + $0x20] sm:$0xff]
        %v869 = vld [vmem:[#allocation7 + $0x28] sm:$0xff]
        %v870 = vld [vmem:[#allocation7 + $0x30] sm:$0xff]
        %v871 = vld [vmem:[#allocation7 + $0x38] sm:$0xff]
        %v872 = vld [vmem:[#allocation7 + $0x40] sm:$0xff]
        %v873 = vld [vmem:[#allocation7 + $0x48] sm:$0xff]
        %v874 = vld [vmem:[#allocation7 + $0x50] sm:$0xff]
        %v875 = vld [vmem:[#allocation7 + $0x58] sm:$0xff]
        %v876 = vld [vmem:[#allocation7 + $0x60] sm:$0xff]
        %v877 = vld [vmem:[#allocation7 + $0x68] sm:$0xff]
        %v878 = vld [vmem:[#allocation7 + $0x70] sm:$0xff]
        %v879 = vld [vmem:[#allocation7 + $0x78] sm:$0xff]
        %v880 = vld [vmem:[#allocation7 + $0x80] sm:$0xff]
        %v881 = vld [vmem:[#allocation7 + $0x88] sm:$0xff]
        %v882 = vld [vmem:[#allocation7 + $0x90] sm:$0xff]
        %v883 = vld [vmem:[#allocation7 + $0x98] sm:$0xff]
        %v884 = vld [vmem:[#allocation7 + $0xa0] sm:$0xff]
        %v885 = vld [vmem:[#allocation7 + $0xa8] sm:$0xff]
        %v886 = vld [vmem:[#allocation7 + $0xb0] sm:$0xff]
        %v887 = vld [vmem:[#allocation7 + $0xb8] sm:$0xff]
        %v888 = vld [vmem:[#allocation7 + $0xc0] sm:$0xff]
        %v889 = vld [vmem:[#allocation7 + $0xc8] sm:$0xff]
        %v890 = vld [vmem:[#allocation7 + $0xd0] sm:$0xff]
        %v891 = vld [vmem:[#allocation7 + $0xd8] sm:$0xff]
        %v892 = vld [vmem:[#allocation7 + $0xe0] sm:$0xff]
        %v893 = vld [vmem:[#allocation7 + $0xe8] sm:$0xff]
        %v894 = vld [vmem:[#allocation7 + $0xf0] sm:$0xff]
        %v895 = vld [vmem:[#allocation7 + $0xf8] sm:$0xff]
        %v928 = vunpack.c.l.b16 %v864
        %v929 = vunpack.c.h.b16 %v864
        %v930 = vunpack.c.l.b16 %v865
        %v931 = vunpack.c.h.b16 %v865
        %v932 = vunpack.c.l.b16 %v866
        %v933 = vunpack.c.h.b16 %v866
        %v934 = vunpack.c.l.b16 %v867
        %v935 = vunpack.c.h.b16 %v867
        %v936 = vunpack.c.l.b16 %v868
        %v937 = vunpack.c.h.b16 %v868
        %v938 = vunpack.c.l.b16 %v869
        %v939 = vunpack.c.h.b16 %v869
        %v940 = vunpack.c.l.b16 %v870
        %v941 = vunpack.c.h.b16 %v870
        %v942 = vunpack.c.l.b16 %v871
        %v943 = vunpack.c.h.b16 %v871
        %v944 = vunpack.c.l.b16 %v872
        %v945 = vunpack.c.h.b16 %v872
        %v946 = vunpack.c.l.b16 %v873
        %v947 = vunpack.c.h.b16 %v873
        %v948 = vunpack.c.l.b16 %v874
        %v949 = vunpack.c.h.b16 %v874
        %v950 = vunpack.c.l.b16 %v875
        %v951 = vunpack.c.h.b16 %v875
        %v952 = vunpack.c.l.b16 %v876
        %v953 = vunpack.c.h.b16 %v876
        %v954 = vunpack.c.l.b16 %v877
        %v955 = vunpack.c.h.b16 %v877
        %v956 = vunpack.c.l.b16 %v878
        %v957 = vunpack.c.h.b16 %v878
        %v958 = vunpack.c.l.b16 %v879
        %v959 = vunpack.c.h.b16 %v879
        %v960 = vunpack.c.l.b16 %v880
        %v961 = vunpack.c.h.b16 %v880
        %v962 = vunpack.c.l.b16 %v881
        %v963 = vunpack.c.h.b16 %v881
        %v964 = vunpack.c.l.b16 %v882
        %v965 = vunpack.c.h.b16 %v882
        %v966 = vunpack.c.l.b16 %v883
        %v967 = vunpack.c.h.b16 %v883
        %v968 = vunpack.c.l.b16 %v884
        %v969 = vunpack.c.h.b16 %v884
        %v970 = vunpack.c.l.b16 %v885
        %v971 = vunpack.c.h.b16 %v885
        %v972 = vunpack.c.l.b16 %v886
        %v973 = vunpack.c.h.b16 %v886
        %v974 = vunpack.c.l.b16 %v887
        %v975 = vunpack.c.h.b16 %v887
        %v976 = vunpack.c.l.b16 %v888
        %v977 = vunpack.c.h.b16 %v888
        %v978 = vunpack.c.l.b16 %v889
        %v979 = vunpack.c.h.b16 %v889
        %v980 = vunpack.c.l.b16 %v890
        %v981 = vunpack.c.h.b16 %v890
        %v982 = vunpack.c.l.b16 %v891
        %v983 = vunpack.c.h.b16 %v891
        %v984 = vunpack.c.l.b16 %v892
        %v985 = vunpack.c.h.b16 %v892
        %v986 = vunpack.c.l.b16 %v893
        %v987 = vunpack.c.h.b16 %v893
        %v988 = vunpack.c.l.b16 %v894
        %v989 = vunpack.c.h.b16 %v894
        %v990 = vunpack.c.l.b16 %v895
        %v991 = vunpack.c.h.b16 %v895
        %v992 = vpack.c.b16 %v930, %v928
        %v993 = vpack.c.b16 %v931, %v929
        %v994 = vpack.c.b16 %v934, %v932
        %v995 = vpack.c.b16 %v935, %v933
        %v996 = vpack.c.b16 %v938, %v936
        %v997 = vpack.c.b16 %v939, %v937
        %v998 = vpack.c.b16 %v942, %v940
        %v999 = vpack.c.b16 %v943, %v941
        %v1000 = vpack.c.b16 %v946, %v944
        %v1001 = vpack.c.b16 %v947, %v945
        %v1002 = vpack.c.b16 %v950, %v948
        %v1003 = vpack.c.b16 %v951, %v949
        %v1004 = vpack.c.b16 %v954, %v952
        %v1005 = vpack.c.b16 %v955, %v953
        %v1006 = vpack.c.b16 %v958, %v956
        %v1007 = vpack.c.b16 %v959, %v957
        %v1008 = vpack.c.b16 %v962, %v960
        %v1009 = vpack.c.b16 %v963, %v961
        %v1010 = vpack.c.b16 %v966, %v964
        %v1011 = vpack.c.b16 %v967, %v965
        %v1012 = vpack.c.b16 %v970, %v968
        %v1013 = vpack.c.b16 %v971, %v969
        %v1014 = vpack.c.b16 %v974, %v972
        %v1015 = vpack.c.b16 %v975, %v973
        %v1016 = vpack.c.b16 %v978, %v976
        %v1017 = vpack.c.b16 %v979, %v977
        %v1018 = vpack.c.b16 %v982, %v980
        %v1019 = vpack.c.b16 %v983, %v981
        %v1020 = vpack.c.b16 %v986, %v984
        %v1021 = vpack.c.b16 %v987, %v985
        %v1022 = vpack.c.b16 %v990, %v988
        %v1023 = vpack.c.b16 %v991, %v989
        %1056 = vmatprep.subr.bf16.mxu0 %v993
        %1057 = vmatpush1.bf16.msra.mxu0 %v992
        %1058 = vmatprep.subr.bf16.mxu0 %v995
        %1059 = vmatpush1.bf16.msra.mxu0 %v994
        %1060 = vmatprep.subr.bf16.mxu0 %v997
        %1061 = vmatpush1.bf16.msra.mxu0 %v996
        %1062 = vmatprep.subr.bf16.mxu0 %v999
        %1063 = vmatpush1.bf16.msra.mxu0 %v998
        %1064 = vmatprep.subr.bf16.mxu0 %v1001
        %1065 = vmatpush1.bf16.msra.mxu0 %v1000
        %1066 = vmatprep.subr.bf16.mxu0 %v1003
        %1067 = vmatpush1.bf16.msra.mxu0 %v1002
        %1068 = vmatprep.subr.bf16.mxu0 %v1005
        %1069 = vmatpush1.bf16.msra.mxu0 %v1004
        %1070 = vmatprep.subr.bf16.mxu0 %v1007
        %1071 = vmatpush1.bf16.msra.mxu0 %v1006
        %1072 = vmatprep.subr.bf16.mxu0 %v1009
        %1073 = vmatpush1.bf16.msra.mxu0 %v1008
        %1074 = vmatprep.subr.bf16.mxu0 %v1011
        %1075 = vmatpush1.bf16.msra.mxu0 %v1010
        %1076 = vmatprep.subr.bf16.mxu0 %v1013
        %1077 = vmatpush1.bf16.msra.mxu0 %v1012
        %1078 = vmatprep.subr.bf16.mxu0 %v1015
        %1079 = vmatpush1.bf16.msra.mxu0 %v1014
        %1080 = vmatprep.subr.bf16.mxu0 %v1017
        %1081 = vmatpush1.bf16.msra.mxu0 %v1016
        %1082 = vmatprep.subr.bf16.mxu0 %v1019
        %1083 = vmatpush1.bf16.msra.mxu0 %v1018
        %1084 = vmatprep.subr.bf16.mxu0 %v1021
        %1085 = vmatpush1.bf16.msra.mxu0 %v1020
        %1086 = vmatprep.subr.bf16.mxu0 %v1023
        %1087 = vmatpush1.bf16.msra.mxu0 %v1022
        %1088 = vmatprep.mubr.bf16.mxu0 %v861
        %1089 = vmatmul.mubr.bf16.gmra.mrb[0].mxu0 %v860
        %v1090 = vpop.f32.mrb[0].mxu0
        %v1091 = vadd.f32 0.0, %v1090
        %v1092 = vpop.f32.mrb[0].mxu0
        %v1093 = vadd.f32 0.0, %v1092
        %v1094 = vpop.f32.mrb[0].mxu0
        %v1095 = vadd.f32 0.0, %v1094
        %v1096 = vpop.f32.mrb[0].mxu0
        %v1097 = vadd.f32 0.0, %v1096
        %1098 = vmatprep.mubr.bf16.mxu0 %v863
        %1099 = vmatmul.mubr.bf16.gmra.mrb[0].mxu0 %v862
        %v1100 = vpop.f32.mrb[0].mxu0
        %v1101 = vadd.f32 0.0, %v1100
        %v1102 = vpop.f32.mrb[0].mxu0
        %v1103 = vadd.f32 0.0, %v1102
        %v1104 = vpop.f32.mrb[0].mxu0
        %v1105 = vadd.f32 0.0, %v1104
        %v1106 = vpop.f32.mrb[0].mxu0
        %v1107 = vadd.f32 0.0, %v1106
        %1108 = vdwg.mxu0
        %v1110 = vlaneseq
        %v1111 = vshrl.u32 %v1110, 7
        %v1112 = vsub.s32 0, %v1111
        %v1113 = vrot.slane %v399, %v1112
        %v1114 = vlaneseq
        %v1115 = vshrl.u32 %v1114, 7
        %v1116 = vsub.s32 1, %v1115
        %v1117 = vrot.slane %v399, %v1116
        %v1120 = vmul.f32 %v1091, %v1113
        %v1121 = vmul.f32 %v1093, %v1117
        %v1122 = vmul.f32 %v1095, %v1113
        %v1123 = vmul.f32 %v1097, %v1117
        %v1124 = vmul.f32 %v1101, %v1113
        %v1125 = vmul.f32 %v1103, %v1117
        %v1126 = vmul.f32 %v1105, %v1113
        %v1127 = vmul.f32 %v1107, %v1117
        %v1129 = vlaneseq
        %v1130 = vshrl.u32 %v1129, 7
        %v1131 = vsub.s32 0, %v1130
        %v1132 = vrot.slane %v404, %v1131
        %v1133 = vlaneseq
        %v1134 = vshrl.u32 %v1133, 7
        %v1135 = vsub.s32 1, %v1134
        %v1136 = vrot.slane %v404, %v1135
        %v1139 = vadd.f32 %v1120, %v1132
        %v1140 = vadd.f32 %v1121, %v1136
        %v1141 = vadd.f32 %v1122, %v1132
        %v1142 = vadd.f32 %v1123, %v1136
        %v1143 = vadd.f32 %v1124, %v1132
        %v1144 = vadd.f32 %v1125, %v1136
        %v1145 = vadd.f32 %v1126, %v1132
        %v1146 = vadd.f32 %v1127, %v1136
        %v1147 = vmax.f32 %v1139, 0.0
        %v1148 = vmax.f32 %v1140, 0.0
        %v1149 = vmax.f32 %v1141, 0.0
        %v1150 = vmax.f32 %v1142, 0.0
        %v1151 = vmax.f32 %v1143, 0.0
        %v1152 = vmax.f32 %v1144, 0.0
        %v1153 = vmax.f32 %v1145, 0.0
        %v1154 = vmax.f32 %v1146, 0.0
        %v1155 = vpack.c.bf16 %v1149, %v1147
        %v1156 = vpack.c.bf16 %v1150, %v1148
        %v1157 = vpack.c.bf16 %v1153, %v1151
        %v1158 = vpack.c.bf16 %v1154, %v1152
        %v1159 = vld [vmem:[#allocation9] sm:$0xf]
        %v1160 = vld [vmem:[#allocation9 + $0x4] sm:$0xf]
        %v1161 = vld [vmem:[#allocation9 + $0x8] sm:$0xf]
        %v1162 = vld [vmem:[#allocation9 + $0xc] sm:$0xf]
        %v1163 = vld [vmem:[#allocation9 + $0x10] sm:$0xf]
        %v1164 = vld [vmem:[#allocation9 + $0x14] sm:$0xf]
        %v1165 = vld [vmem:[#allocation9 + $0x18] sm:$0xf]
        %v1166 = vld [vmem:[#allocation9 + $0x1c] sm:$0xf]
        %v1167 = vld [vmem:[#allocation9 + $0x20] sm:$0xf]
        %v1168 = vld [vmem:[#allocation9 + $0x24] sm:$0xf]
        %v1169 = vld [vmem:[#allocation9 + $0x28] sm:$0xf]
        %v1170 = vld [vmem:[#allocation9 + $0x2c] sm:$0xf]
        %v1171 = vld [vmem:[#allocation9 + $0x30] sm:$0xf]
        %v1172 = vld [vmem:[#allocation9 + $0x34] sm:$0xf]
        %v1173 = vld [vmem:[#allocation9 + $0x38] sm:$0xf]
        %v1174 = vld [vmem:[#allocation9 + $0x3c] sm:$0xf]
        %v1175 = vld [vmem:[#allocation9 + $0x40] sm:$0xf]
        %v1176 = vld [vmem:[#allocation9 + $0x44] sm:$0xf]
        %v1177 = vld [vmem:[#allocation9 + $0x48] sm:$0xf]
        %v1178 = vld [vmem:[#allocation9 + $0x4c] sm:$0xf]
        %v1179 = vld [vmem:[#allocation9 + $0x50] sm:$0xf]
        %v1180 = vld [vmem:[#allocation9 + $0x54] sm:$0xf]
        %v1181 = vld [vmem:[#allocation9 + $0x58] sm:$0xf]
        %v1182 = vld [vmem:[#allocation9 + $0x5c] sm:$0xf]
        %v1183 = vld [vmem:[#allocation9 + $0x60] sm:$0xf]
        %v1184 = vld [vmem:[#allocation9 + $0x64] sm:$0xf]
        %v1185 = vld [vmem:[#allocation9 + $0x68] sm:$0xf]
        %v1186 = vld [vmem:[#allocation9 + $0x6c] sm:$0xf]
        %v1187 = vld [vmem:[#allocation9 + $0x70] sm:$0xf]
        %v1188 = vld [vmem:[#allocation9 + $0x74] sm:$0xf]
        %v1189 = vld [vmem:[#allocation9 + $0x78] sm:$0xf]
        %v1190 = vld [vmem:[#allocation9 + $0x7c] sm:$0xf]
        %v1191 = vld [vmem:[%s7] sm:$0x1]
        %v1193 = vlaneseq
        %v1194 = vshrl.u32 %v1193, 7
        %v1195 = vsub.s32 0, %v1194
        %v1196 = vrot.slane %v1191, %v1195
        %v1230 = vunpack.c.l.b16 %v1159
        %v1231 = vunpack.c.l.b16 %v1160
        %v1232 = vunpack.c.l.b16 %v1161
        %v1233 = vunpack.c.l.b16 %v1162
        %v1234 = vunpack.c.l.b16 %v1163
        %v1235 = vunpack.c.l.b16 %v1164
        %v1236 = vunpack.c.l.b16 %v1165
        %v1237 = vunpack.c.l.b16 %v1166
        %v1238 = vunpack.c.l.b16 %v1167
        %v1239 = vunpack.c.l.b16 %v1168
        %v1240 = vunpack.c.l.b16 %v1169
        %v1241 = vunpack.c.l.b16 %v1170
        %v1242 = vunpack.c.l.b16 %v1171
        %v1243 = vunpack.c.l.b16 %v1172
        %v1244 = vunpack.c.l.b16 %v1173
        %v1245 = vunpack.c.l.b16 %v1174
        %v1246 = vunpack.c.l.b16 %v1175
        %v1247 = vunpack.c.l.b16 %v1176
        %v1248 = vunpack.c.l.b16 %v1177
        %v1249 = vunpack.c.l.b16 %v1178
        %v1250 = vunpack.c.l.b16 %v1179
        %v1251 = vunpack.c.l.b16 %v1180
        %v1252 = vunpack.c.l.b16 %v1181
        %v1253 = vunpack.c.l.b16 %v1182
        %v1254 = vunpack.c.l.b16 %v1183
        %v1255 = vunpack.c.l.b16 %v1184
        %v1256 = vunpack.c.l.b16 %v1185
        %v1257 = vunpack.c.l.b16 %v1186
        %v1258 = vunpack.c.l.b16 %v1187
        %v1259 = vunpack.c.l.b16 %v1188
        %v1260 = vunpack.c.l.b16 %v1189
        %v1261 = vunpack.c.l.b16 %v1190
        %v1262 = vpack.c.b16 %v1231, %v1230
        %v1263 = vpack.c.b16 %v1233, %v1232
        %v1264 = vpack.c.b16 %v1235, %v1234
        %v1265 = vpack.c.b16 %v1237, %v1236
        %v1266 = vpack.c.b16 %v1239, %v1238
        %v1267 = vpack.c.b16 %v1241, %v1240
        %v1268 = vpack.c.b16 %v1243, %v1242
        %v1269 = vpack.c.b16 %v1245, %v1244
        %v1270 = vpack.c.b16 %v1247, %v1246
        %v1271 = vpack.c.b16 %v1249, %v1248
        %v1272 = vpack.c.b16 %v1251, %v1250
        %v1273 = vpack.c.b16 %v1253, %v1252
        %v1274 = vpack.c.b16 %v1255, %v1254
        %v1275 = vpack.c.b16 %v1257, %v1256
        %v1276 = vpack.c.b16 %v1259, %v1258
        %v1277 = vpack.c.b16 %v1261, %v1260
        %1294 = vmatprep.subr.bf16.mxu0 0
        %1295 = vmatpush1.bf16.msra.mxu0 %v1262
        %1296 = vmatprep.subr.bf16.mxu0 0
        %1297 = vmatpush1.bf16.msra.mxu0 %v1263
        %1298 = vmatprep.subr.bf16.mxu0 0
        %1299 = vmatpush1.bf16.msra.mxu0 %v1264
        %1300 = vmatprep.subr.bf16.mxu0 0
        %1301 = vmatpush1.bf16.msra.mxu0 %v1265
        %1302 = vmatprep.subr.bf16.mxu0 0
        %1303 = vmatpush1.bf16.msra.mxu0 %v1266
        %1304 = vmatprep.subr.bf16.mxu0 0
        %1305 = vmatpush1.bf16.msra.mxu0 %v1267
        %1306 = vmatprep.subr.bf16.mxu0 0
        %1307 = vmatpush1.bf16.msra.mxu0 %v1268
        %1308 = vmatprep.subr.bf16.mxu0 0
        %1309 = vmatpush1.bf16.msra.mxu0 %v1269
        %1310 = vmatprep.subr.bf16.mxu0 0
        %1311 = vmatpush1.bf16.msra.mxu0 %v1270
        %1312 = vmatprep.subr.bf16.mxu0 0
        %1313 = vmatpush1.bf16.msra.mxu0 %v1271
        %1314 = vmatprep.subr.bf16.mxu0 0
        %1315 = vmatpush1.bf16.msra.mxu0 %v1272
        %1316 = vmatprep.subr.bf16.mxu0 0
        %1317 = vmatpush1.bf16.msra.mxu0 %v1273
        %1318 = vmatprep.subr.bf16.mxu0 0
        %1319 = vmatpush1.bf16.msra.mxu0 %v1274
        %1320 = vmatprep.subr.bf16.mxu0 0
        %1321 = vmatpush1.bf16.msra.mxu0 %v1275
        %1322 = vmatprep.subr.bf16.mxu0 0
        %1323 = vmatpush1.bf16.msra.mxu0 %v1276
        %1324 = vmatprep.subr.bf16.mxu0 0
        %1325 = vmatpush1.bf16.msra.mxu0 %v1277
        %1326 = vmatprep.mubr.bf16.mxu0 %v1156
        %1327 = vmatmul.mubr.bf16.gmra.mrb[0].mxu0 %v1155
        %v1328 = vpop.f32.mrb[0].mxu0
        %v1329 = vadd.f32 %v1196, %v1328
        %v1330 = vpop.f32.mrb[0].mxu0
        %v1331 = vpop.f32.mrb[0].mxu0
        %v1332 = vadd.f32 %v1196, %v1331
        %v1333 = vpop.f32.mrb[0].mxu0
        %1334 = vmatprep.mubr.bf16.mxu0 %v1158
        %1335 = vmatmul.mubr.bf16.gmra.mrb[0].mxu0 %v1157
        %v1336 = vpop.f32.mrb[0].mxu0
        %v1337 = vadd.f32 %v1196, %v1336
        %v1338 = vpop.f32.mrb[0].mxu0
        %v1339 = vpop.f32.mrb[0].mxu0
        %v1340 = vadd.f32 %v1196, %v1339
        %v1341 = vpop.f32.mrb[0].mxu0
        %1342 = vdwg.mxu0
        %vm1343 = vcmask 15360
        %1344 = vst.msk [vmem:[%s383] sm:$0xff] %vm1343, %v1329
        %1345 = vst.msk [vmem:[%s383 + $0x8] sm:$0xff] %vm1343, %v1332
        %1346 = vst.msk [vmem:[%s383 + $0x10] sm:$0xff] %vm1343, %v1337
        %1347 = vst.msk [vmem:[%s383 + $0x18] sm:$0xff] %vm1343, %v1340
        %s1348 = sand.u32 %s205, 1
        %s1349 = sand.u32 %s205, 1
        %s1350 = smul.addr %s1349, 32
        %s1351 = scalar_lea.vmem [#allocation10], %s1350
        // Predicated region
        $region73: #{tpu_custom_call.1} parent=51 // pred_check
          %p1352 = pneg %p215
        $region74: #{tpu_custom_call.1} parent=51 // pred_check_branch
          %1354 = sbr.rel (%p1352) target = $region76
        $region75: #{tpu_custom_call.1} parent=51 // pred_region
          %s1355 = smul.u32 4, %s24
          %s1356 = ssub.s32 7, %s1355
          %p1357 = scmp.lt.s32.totalorder %s1356, 4
          %s1358 = scalar_select %p1357, %s1356, 4
          %s1359 = smul.u32 128, %s1358
          %p1360 = scmp.ne.s32.totalorder 0, %s1359
          %s1361 = smul.addr %s1355, 8
          %s1362 = scalar_lea.vmem %s8, %s1361
          // Predicated region
          $region77: #{tpu_custom_call.1} parent=75 // pred_check
            %p1363 = pneg %p1360
          $region78: #{tpu_custom_call.1} parent=75 // pred_check_branch
            %1365 = sbr.rel (%p1363) target = $region80
          $region79: #{tpu_custom_call.1} parent=75 // pred_region
            // Predicated region
            $region81: #{tpu_custom_call.1} parent=79 // pred_check
              _
            $region82: #{tpu_custom_call.1} parent=79 // pred_check_branch
              %1367 = sbr.rel (0) target = $region84
            $region83: #{tpu_custom_call.1} parent=79 // pred_region
              // Predicated region
              $region103: #{tpu_custom_call.1} parent=83 // pred_check
                _
              $region104: #{tpu_custom_call.1} parent=83 // pred_check_branch
                %1422 = sbr.rel (0) target = $region106
              $region105: #{tpu_custom_call.1} parent=83 // pred_region
                %s1423 = sshrl.u32 %s1358, 2
                // While loop
                $region107: #{tpu_custom_call.1} parent=105 // loop_pre_header
                  _
                $region108: #{tpu_custom_call.1} parent=105 // loop_header
                  %s1425 = sphi 0, %s1427
                  %p1426 = scmp.ge.s32.totalorder %s1425, %s1423
                  %s1430 = sphi 0, %s1443
                  %s1431 = sphi %s1351, %s1446
                  %s1432 = sphi %s1362, %s1447
                $region109: #{tpu_custom_call.1} parent=105 // loop_header_branch
                  %1429 = sbr.rel (%p1426) target = $region113
                $region110: #{tpu_custom_call.1} parent=105 // loop_body
                  %v1433 = vld [vmem:[%s1431] sm:$0xff]
                  %1434 = vst [vmem:[%s1432] sm:$0xff] %v1433
                  %v1435 = vld [vmem:[%s1431 + $0x8] sm:$0xff]
                  %1436 = vst [vmem:[%s1432 + $0x8] sm:$0xff] %v1435
                  %v1437 = vld [vmem:[%s1431 + $0x10] sm:$0xff]
                  %1438 = vst [vmem:[%s1432 + $0x10] sm:$0xff] %v1437
                  %v1439 = vld [vmem:[%s1431 + $0x18] sm:$0xff]
                  %1440 = vst [vmem:[%s1432 + $0x18] sm:$0xff] %v1439
                  %s1441 = sadd.s32 1, %s1430
                  %p1442 = scmp.ge.s32.totalorder %s1441, %s1423
                  %s1443 = scalar_select %p1442, 0, %s1441
                  %s1444 = smul.u32 %s1443, 32
                  %s1445 = smul.u32 %s1443, 32
                  %s1446 = scalar_lea.vmem %s1351, %s1444 [#allocation10]
                  %s1447 = scalar_lea.vmem %s1362, %s1445
                $region111: #{tpu_custom_call.1} parent=105 // loop_footer
                  %s1427 = sadd.s32 %s1425, 1
                $region112: #{tpu_custom_call.1} parent=105 // loop_footer_branch
                  %1424 = sbr.rel target = $region108
                $region113: #{tpu_custom_call.1} parent=105 // loop_exit
                  _
                %s1448 = sshrl.u32 %s1358, 2
                %s1449 = sand.u32 %s1358, 3
                %s1450 = smul.u32 %s1448, 4
                %s1451 = smul.u32 8, %s1450
                %s1452 = scalar_lea.vmem %s1351, %s1451 [#allocation10]
                %s1453 = smul.u32 8, %s1450
                %s1454 = scalar_lea.vmem %s1362, %s1453
                // While loop
                $region114: #{tpu_custom_call.1} parent=105 // loop_pre_header
                  _
                $region115: #{tpu_custom_call.1} parent=105 // loop_header
                  %s1456 = sphi 0, %s1458
                  %p1457 = scmp.ge.s32.totalorder %s1456, %s1449
                  %s1461 = sphi 0, %s1468
                  %s1462 = sphi %s1452, %s1471
                  %s1463 = sphi %s1454, %s1472
                $region116: #{tpu_custom_call.1} parent=105 // loop_header_branch
                  %1460 = sbr.rel (%p1457) target = $region120
                $region117: #{tpu_custom_call.1} parent=105 // loop_body
                  %v1464 = vld [vmem:[%s1462] sm:$0xff]
                  %1465 = vst [vmem:[%s1463] sm:$0xff] %v1464
                  %s1466 = sadd.s32 1, %s1461
                  %p1467 = scmp.ge.s32.totalorder %s1466, %s1449
                  %s1468 = scalar_select %p1467, 0, %s1466
                  %s1469 = smul.u32 %s1468, 8
                  %s1470 = smul.u32 %s1468, 8
                  %s1471 = scalar_lea.vmem %s1452, %s1469 [#allocation10]
                  %s1472 = scalar_lea.vmem %s1454, %s1470
                $region118: #{tpu_custom_call.1} parent=105 // loop_footer
                  %s1458 = sadd.s32 %s1456, 1
                $region119: #{tpu_custom_call.1} parent=105 // loop_footer_branch
                  %1455 = sbr.rel target = $region115
                $region120: #{tpu_custom_call.1} parent=105 // loop_exit
                  _
              $region106: #{tpu_custom_call.1} parent=83 // pred_fallthru
                _
              // Predicated region
              $region121: #{tpu_custom_call.1} parent=83 // pred_check
                _
              $region122: #{tpu_custom_call.1} parent=83 // pred_check_branch
                %1474 = sbr.rel target = $region124
              $region123: #{tpu_custom_call.1} parent=83 // pred_region
                _
              $region124: #{tpu_custom_call.1} parent=83 // pred_fallthru
                _
            $region84: #{tpu_custom_call.1} parent=79 // pred_fallthru
              _
            // Predicated region
            $region85: #{tpu_custom_call.1} parent=79 // pred_check
              _
            $region86: #{tpu_custom_call.1} parent=79 // pred_check_branch
              %1369 = sbr.rel target = $region88
            $region87: #{tpu_custom_call.1} parent=79 // pred_region
              %s1371 = sshrl.u32 %s1358, 2
              // While loop
              $region89: #{tpu_custom_call.1} parent=87 // loop_pre_header
                _
              $region90: #{tpu_custom_call.1} parent=87 // loop_header
                %s1373 = sphi 0, %s1375
                %p1374 = scmp.ge.s32.totalorder %s1373, %s1371
                %s1378 = sphi 0, %s1391
                %s1379 = sphi %s1351, %s1394
                %s1380 = sphi %s1362, %s1395
              $region91: #{tpu_custom_call.1} parent=87 // loop_header_branch
                %1377 = sbr.rel (%p1374) target = $region95
              $region92: #{tpu_custom_call.1} parent=87 // loop_body
                %v1381 = vld [vmem:[%s1379] sm:$0xff]
                %1382 = vst [vmem:[%s1380] sm:$0xff] %v1381
                %v1383 = vld [vmem:[%s1379 + $0x8] sm:$0xff]
                %1384 = vst [vmem:[%s1380 + $0x8] sm:$0xff] %v1383
                %v1385 = vld [vmem:[%s1379 + $0x10] sm:$0xff]
                %1386 = vst [vmem:[%s1380 + $0x10] sm:$0xff] %v1385
                %v1387 = vld [vmem:[%s1379 + $0x18] sm:$0xff]
                %1388 = vst [vmem:[%s1380 + $0x18] sm:$0xff] %v1387
                %s1389 = sadd.s32 1, %s1378
                %p1390 = scmp.ge.s32.totalorder %s1389, %s1371
                %s1391 = scalar_select %p1390, 0, %s1389
                %s1392 = smul.u32 %s1391, 32
                %s1393 = smul.u32 %s1391, 32
                %s1394 = scalar_lea.vmem %s1351, %s1392 [#allocation10]
                %s1395 = scalar_lea.vmem %s1362, %s1393
              $region93: #{tpu_custom_call.1} parent=87 // loop_footer
                %s1375 = sadd.s32 %s1373, 1
              $region94: #{tpu_custom_call.1} parent=87 // loop_footer_branch
                %1372 = sbr.rel target = $region90
              $region95: #{tpu_custom_call.1} parent=87 // loop_exit
                _
              %s1396 = sshrl.u32 %s1358, 2
              %s1397 = sand.u32 %s1358, 3
              %s1398 = smul.u32 %s1396, 4
              %s1399 = smul.u32 8, %s1398
              %s1400 = scalar_lea.vmem %s1351, %s1399 [#allocation10]
              %s1401 = smul.u32 8, %s1398
              %s1402 = scalar_lea.vmem %s1362, %s1401
              // While loop
              $region96: #{tpu_custom_call.1} parent=87 // loop_pre_header
                _
              $region97: #{tpu_custom_call.1} parent=87 // loop_header
                %s1404 = sphi 0, %s1406
                %p1405 = scmp.ge.s32.totalorder %s1404, %s1397
                %s1409 = sphi 0, %s1416
                %s1410 = sphi %s1400, %s1419
                %s1411 = sphi %s1402, %s1420
              $region98: #{tpu_custom_call.1} parent=87 // loop_header_branch
                %1408 = sbr.rel (%p1405) target = $region102
              $region99: #{tpu_custom_call.1} parent=87 // loop_body
                %v1412 = vld [vmem:[%s1410] sm:$0xff]
                %1413 = vst [vmem:[%s1411] sm:$0xff] %v1412
                %s1414 = sadd.s32 1, %s1409
                %p1415 = scmp.ge.s32.totalorder %s1414, %s1397
                %s1416 = scalar_select %p1415, 0, %s1414
                %s1417 = smul.u32 %s1416, 8
                %s1418 = smul.u32 %s1416, 8
                %s1419 = scalar_lea.vmem %s1400, %s1417 [#allocation10]
                %s1420 = scalar_lea.vmem %s1402, %s1418
              $region100: #{tpu_custom_call.1} parent=87 // loop_footer
                %s1406 = sadd.s32 %s1404, 1
              $region101: #{tpu_custom_call.1} parent=87 // loop_footer_branch
                %1403 = sbr.rel target = $region97
              $region102: #{tpu_custom_call.1} parent=87 // loop_exit
                _
            $region88: #{tpu_custom_call.1} parent=79 // pred_fallthru
              _
          $region80: #{tpu_custom_call.1} parent=75 // pred_fallthru
            _
          %1475 = vnop
        $region76: #{tpu_custom_call.1} parent=51 // pred_fallthru
          _
      $region52: #{tpu_custom_call.1} parent=5 // pred_fallthru
        _
      %p1476 = scmp.le.s32.totalorder 2, %s19
      // Predicated region
      $region125: #{tpu_custom_call.1} parent=5 // pred_check
        %p1477 = pneg %p1476
      $region126: #{tpu_custom_call.1} parent=5 // pred_check_branch
        %1479 = sbr.rel (%p1477) target = $region128
      $region127: #{tpu_custom_call.1} parent=5 // pred_region
        %s1480 = ssub.s32 %s19, 2
        // Predicated region
        $region129: #{tpu_custom_call.1} parent=127 // pred_check
          %p1481 = pneg %p221
        $region130: #{tpu_custom_call.1} parent=127 // pred_check_branch
          %1483 = sbr.rel (%p1481) target = $region132
        $region131: #{tpu_custom_call.1} parent=127 // pred_region
          %s1484 = sand.u32 %s206, 1
          %s1485 = sand.u32 %s206, 1
          %s1486 = smul.addr %s1485, 32
          %s1487 = scalar_lea.vmem [#allocation10], %s1486
        $region132: #{tpu_custom_call.1} parent=127 // pred_fallthru
          _
      $region128: #{tpu_custom_call.1} parent=5 // pred_fallthru
        _
    $region6: #{tpu_custom_call.1} parent=1 // loop_footer
      %s23 = sadd.s32 1, %s19
    $region7: #{tpu_custom_call.1} parent=1 // loop_footer_branch
      %18 = sbr.rel target = $region3
    $region8: #{tpu_custom_call.1} parent=1 // loop_exit
      _
    %1488 = vsyncpa [#allocation3], 1
    %s1489 = scalar_lea.sflag [#allocation3], 1
    %1490 = vsyncpa %s1489, 1
    %1491 = vsyncpa [#allocation5], 1
    %1492 = vsyncpa [#allocation8], 1

</llo_original>
